<compile_context>
chip_gen: v7x
topology: tpu7x:2x2x1
jax: 0.10.0
libtpu: 0.0.40
codegen_flags: <defaults>
</compile_context>

<pallas_src>
import jax
import jax.numpy as jnp
from jax.experimental import pallas as pl
from jax.experimental.pallas import tpu as pltpu

EPS = 1e-15
LANES = 128


def _gmm_resblock_kernel(blk_lo_ref, nblk_ref,                  # scalar prefetch (SMEM)
                         xsrc_ref, w_ref, tgt_ref,              # edge-block inputs
                         x_ref, invdeg_ref,                     # node-tile inputs
                         gstack_ref, rootres_ref, bias_ref,     # lane-padded params
                         out_ref,                               # [tile_n, M] output block
                         acc_ref):                              # [tile_n, 128] f32 scratch
    del blk_lo_ref                                              # used by index_maps only
    i = pl.program_id(0)                                        # node tile ("parallel")
    j = pl.program_id(1)                                        # edge-block step ("arbitrary")
    last_j = pl.num_programs(1) - 1

    tile_n, out_dim = out_ref.shape
    tile_e = tgt_ref.shape[1]
    K = w_ref.shape[1]

    @pl.when(j == 0)
    def _init():
        acc_ref[...] = jnp.zeros_like(acc_ref)

    # Edges are pre-sorted by target; node tile i only intersects edge blocks
    # [blk_lo[i], blk_lo[i]+nblk[i]).  Steps beyond nblk[i] re-point at the
    # previous block (no extra DMA) and skip compute.
    @pl.when(j < nblk_ref[i])
    def _accumulate():
        xs = xsrc_ref[...]                                      # [TE, F]  matmul dtype
        w = w_ref[...]                                          # [TE, K]  f32 (precomputed)
        tgt = tgt_ref[...]                                      # [1,  TE] int32

        # Fused message matmul: concat_k(w_k * x_src) @ stack_k(g_k) -> [TE, 128].
        # One MXU op instead of K tiny ones; rhs is lane-padded to 128 so every
        # downstream intermediate stays lane-dense.
        pieces = [w[:, k:k + 1] * xs.astype(jnp.float32) for k in range(K)]
        lhs = jnp.concatenate(pieces, axis=-1).astype(xs.dtype)      # [TE, K*F]
        msg = jnp.dot(lhs, gstack_ref[...],
                      preferred_element_type=jnp.float32)            # [TE, 128]

        # Scatter-add onto this node tile via a bounded [TN, TE] one-hot matmul.
        # Targets localized by subtracting the tile base ([1, TE] add, not a
        # [TN, TE] add).  Out-of-tile / sentinel targets match no row.
        local_tgt = tgt - i * tile_n                                  # [1, TE]
        rows = jax.lax.broadcasted_iota(jnp.int32, (tile_n, tile_e), 0)
        onehot = (rows == local_tgt).astype(xs.dtype)                 # exact 0/1
        acc_ref[...] += jnp.dot(onehot, msg.astype(xs.dtype),
                                preferred_element_type=jnp.float32)   # [TN, 128]

    @pl.when(j == last_j)
    def _epilogue():
        x = x_ref[...]                                          # [TN, F] f32
        agg = acc_ref[...] * invdeg_ref[...]                    # mean aggregation [TN, 128]
        # Residual Identity is folded into the root weight (root_res = root + I),
        # so y = agg + x @ root_res + bias == (agg + x@root + bias) + x.
        y = (agg
             + jnp.dot(x, rootres_ref[...], preferred_element_type=jnp.float32)
             + bias_ref[...])                                   # [TN, 128]
        # TODO(synk): nn.Dropout treated as eval-mode identity (no stochastic mask).
        act = y * jax.nn.sigmoid(y)                             # SiLU
        # Store exactly the payload columns; per-node-tile store is fully
        # amortized by the per-tile edge-block compute, and HBM writeback is a
        # single contiguous [TN, M] chunk (no 16x slab write amplification).
        out_ref[...] = act[:, :out_dim]


def prepare_graph(edge_index, num_nodes, *, tile_n=256, tile_e=2048):
    """Static-topology preprocessing (sort, block ranges, degrees).

    Hoist/cache this across layers / time steps when the graph is static: the
    E-element sort + searchsorted easily cost more than the kernel otherwise.
    """
    src = edge_index[0].astype(jnp.int32)
    tgt = edge_index[1].astype(jnp.int32)
    E = int(src.shape[0])
    N = int(num_nodes)
    assert E > 0

    order = jnp.argsort(tgt)
    src_s = src[order]
    tgt_s = tgt[order]

    deg = jax.ops.segment_sum(jnp.ones((E,), jnp.float32), tgt_s, num_segments=N)
    inv_deg = 1.0 / jnp.maximum(deg, 1.0)

    n_node_tiles = pl.cdiv(N, tile_n)
    n_edge_tiles = pl.cdiv(E, tile_e)
    n_pad = n_node_tiles * tile_n
    e_pad = n_edge_tiles * tile_e

    # sentinel target == n_pad never matches any node row -> padded edges inert
    tgt_p = jnp.pad(tgt_s, (0, e_pad - E), constant_values=n_pad).reshape(1, e_pad)
    invdeg_p = jnp.pad(inv_deg, (0, n_pad - N), constant_values=1.0).reshape(n_pad, 1)

    # Per-node-tile edge-block ranges (scalar prefetched into SMEM).
    tile_start = jnp.arange(n_node_tiles, dtype=jnp.int32) * tile_n
    e_lo = jnp.searchsorted(tgt_s, tile_start).astype(jnp.int32)
    e_hi = jnp.searchsorted(tgt_s, tile_start + tile_n).astype(jnp.int32)
    nonempty = e_hi > e_lo
    blk_lo = jnp.where(nonempty, e_lo // tile_e, 0).astype(jnp.int32)
    blk_hi = jnp.where(nonempty, (e_hi - 1) // tile_e, -1).astype(jnp.int32)
    nblk = (blk_hi - blk_lo + 1).astype(jnp.int32)            # 0 if no edges hit tile
    max_blk = max(int(jnp.max(nblk)), 1)                      # static grid extent

    return dict(order=order, src_sorted=src_s, tgt_p=tgt_p, invdeg_p=invdeg_p,
                blk_lo=blk_lo, nblk=nblk, max_blk=max_blk,
                num_nodes=N, num_edges=E, tile_n=tile_n, tile_e=tile_e,
                n_node_tiles=n_node_tiles, n_edge_tiles=n_edge_tiles,
                n_pad=n_pad, e_pad=e_pad)


def gmm_resblock_forward(x, edge_attr, params, graph, *,
                         matmul_dtype=jnp.bfloat16,
                         vmem_limit_bytes=32 * 1024 * 1024):
    """x: [N, F] f32, edge_attr: [E, D] f32, graph: output of prepare_graph.

    vmem_limit_bytes: keep <= ~48 MiB when sweeping tiles on v7x (64 MiB
    physical VMEM); v5e/v6e (128 MiB) tolerate far more.  Default footprint is
    a few hundred KB, so 32 MiB is safe on every generation.
    """
    N, F = x.shape
    K, D = params["mu"].shape
    M = params["bias"].shape[0]
    assert F == M, "residual Identity path requires in_dim == out_dim"
    assert graph["num_nodes"] == N

    tile_n, tile_e = graph["tile_n"], graph["tile_e"]
    n_pad, e_pad = graph["n_pad"], graph["e_pad"]
    n_node_tiles, n_edge_tiles = graph["n_node_tiles"], graph["n_edge_tiles"]
    E = graph["num_edges"]

    x = x.astype(jnp.float32)

    # ---- edge-stream inputs in target-sorted order --------------------------
    ea_s = edge_attr.astype(jnp.float32)[graph["order"]]          # [E, D]
    x_src = jnp.take(x, graph["src_sorted"], axis=0)              # [E, F] gather hoisted

    # Gaussian mixture weights hoisted to XLA, exact (ea - mu)^2 form (no
    # expanded-quadratic cancellation); drops the in-kernel feature concat,
    # the [TE, 2D]x[2D, K] matmul and the EUP exp from the hot path.
    mu = params["mu"].astype(jnp.float32)
    sigma = params["sigma"].astype(jnp.float32)
    diff = ea_s[:, None, :] - mu[None, :, :]                       # [E, K, D]
    w = jnp.exp(jnp.sum(-0.5 * diff * diff / (sigma[None] ** 2 + EPS), axis=-1))  # [E, K]

    xsrc_p = jnp.pad(x_src, ((0, e_pad - E), (0, 0))).astype(matmul_dtype)
    w_p = jnp.pad(w, ((0, e_pad - E), (0, 0)))
    x_p = jnp.pad(x, ((0, n_pad - N), (0, 0)))

    # ---- lane-padded parameter matrices --------------------------------------
    # g stacked into one [K*F, 128] message matrix: row k*F+f, col m = g[f, k*M+m].
    g = params["g"].astype(jnp.float32).reshape(F, K, M)
    g_stack = jnp.zeros((K * F, LANES), jnp.float32)
    g_stack = g_stack.at[:, :M].set(jnp.transpose(g, (1, 0, 2)).reshape(K * F, M))
    g_stack = g_stack.astype(matmul_dtype)

    # residual Identity folded into the root weight, lane-padded to 128
    root_res = jnp.zeros((F, LANES), jnp.float32)
    root_res = root_res.at[:, :M].set(params["root"].astype(jnp.float32)
                                      + jnp.eye(F, M, dtype=jnp.float32))
    bias_pad = jnp.zeros((1, LANES), jnp.float32)
    bias_pad = bias_pad.at[0, :M].set(params["bias"].astype(jnp.float32))

    # ---- grid: (node tiles, max edge blocks per node tile) -------------------
    max_blk = graph["max_blk"]

    def edge_blk(i, j, blk_lo_ref, nblk_ref):
        # Clamp to the last useful block so padded steps re-use the previous
        # block (no extra DMA) and never index past the edge array.
        jj = jnp.minimum(j, jnp.maximum(nblk_ref[i] - 1, 0))
        return jnp.minimum(blk_lo_ref[i] + jj, n_edge_tiles - 1)

    e_map = lambda i, j, lo, nb: (edge_blk(i, j, lo, nb), 0)
    e_mapr = lambda i, j, lo, nb: (0, edge_blk(i, j, lo, nb))
    n_map = lambda i, j, lo, nb: (i, 0)
    p_map = lambda i, j, lo, nb: (0, 0)

    grid_spec = pltpu.PrefetchScalarGridSpec(
        num_scalar_prefetch=2,
        grid=(n_node_tiles, max_blk),
        in_specs=[
            pl.BlockSpec((tile_e, F), e_map),          # gathered source features
            pl.BlockSpec((tile_e, K), e_map),          # precomputed Gaussian weights
            pl.BlockSpec((1, tile_e), e_mapr),         # sorted targets (int32)
            pl.BlockSpec((tile_n, F), n_map),          # node features (root input)
            pl.BlockSpec((tile_n, 1), n_map),          # 1/deg
            pl.BlockSpec((K * F, LANES), p_map),       # stacked message matrix
            pl.BlockSpec((F, LANES), p_map),           # root + I (residual folded)
            pl.BlockSpec((1, LANES), p_map),           # bias
        ],
        out_specs=pl.BlockSpec((tile_n, M), n_map),
        scratch_shapes=[pltpu.VMEM((tile_n, LANES), jnp.float32)],
    )

    steps = n_node_tiles * max_blk
    flops = int(2 * steps * tile_e * (K * F) * LANES          # fused message matmul
                + 2 * steps * tile_n * tile_e * LANES         # one-hot scatter matmul
                + 2 * n_pad * F * LANES)                      # root (+residual) matmul
    bytes_accessed = int(steps * tile_e * (F * jnp.dtype(matmul_dtype).itemsize + K * 4 + 4)
                         + n_pad * (F * 4 + 4) + n_pad * M * 4
                         + (K * F + F + 1) * LANES * 4)
    cost = pl.CostEstimate(flops=flops,
                           transcendentals=int(n_pad * LANES),
                           bytes_accessed=bytes_accessed)

    out = pl.pallas_call(
        _gmm_resblock_kernel,
        out_shape=jax.ShapeDtypeStruct((n_pad, M), jnp.float32),
        grid_spec=grid_spec,
        compiler_params=pltpu.CompilerParams(
            dimension_semantics=("parallel", "arbitrary"),   # node-tile axis shards on v7x megacore
            vmem_limit_bytes=vmem_limit_bytes),
        cost_estimate=cost,
    )(graph["blk_lo"], graph["nblk"], xsrc_p, w_p, graph["tgt_p"],
      x_p, graph["invdeg_p"], g_stack, root_res, bias_pad)

    return out[:N, :]


def gmm_resblock(x, edge_index, edge_attr, params, *,
                 tile_n=256, tile_e=2048, matmul_dtype=jnp.bfloat16,
                 vmem_limit_bytes=32 * 1024 * 1024):
    """Convenience wrapper: topology prep + forward in one call."""
    graph = prepare_graph(edge_index, x.shape[0], tile_n=tile_n, tile_e=tile_e)
    return gmm_resblock_forward(x, edge_attr, params, graph,
                                matmul_dtype=matmul_dtype,
                                vmem_limit_bytes=vmem_limit_bytes)


def gmm_resblock_reference(x, edge_index, edge_attr, params):
    """Pure-JAX reference mirroring torch_geometric GMMConv (aggr='mean') + block."""
    src, tgt = edge_index[0], edge_index[1]
    K, D = params["mu"].shape
    M = params["bias"].shape[0]
    N = x.shape[0]

    diff = edge_attr[:, None, :] - params["mu"][None, :, :]            # [E, K, D]
    gauss = jnp.exp(jnp.sum(-0.5 * diff ** 2
                            / (EPS + params["sigma"][None] ** 2), axis=-1))  # [E, K]
    xg = (x @ params["g"]).reshape(N, K, M)                            # [N, K, M]
    msg = jnp.sum(gauss[:, :, None] * xg[src], axis=1)                 # [E, M]
    summed = jax.ops.segment_sum(msg, tgt, num_segments=N)
    deg = jax.ops.segment_sum(jnp.ones((msg.shape[0],), jnp.float32), tgt,
                              num_segments=N)
    agg = summed / jnp.maximum(deg, 1.0)[:, None]
    conv = agg + x @ params["root"] + params["bias"][None, :]
    y = conv + x
    return y * jax.nn.sigmoid(y)


if __name__ == "__main__":
    # GMMResBlock(in_dim=8, out_dim=8, attr_dim=2, kernel_size=3, residual=True,
    # activation='silu', basic_block=False) on a small random graph.
    N, F_IN, F_OUT, ATTR_D, KSIZE, E = 200, 8, 8, 2, 3, 800

    key = jax.random.PRNGKey(0)
    k_x, k_ea, k_src, k_tgt, k_g, k_mu, k_sig, k_root, k_bias = jax.random.split(key, 9)

    x = jax.random.normal(k_x, (N, F_IN), jnp.float32)
    edge_attr = 0.5 * jax.random.normal(k_ea, (E, ATTR_D), jnp.float32)
    edge_index = jnp.stack([
        jax.random.randint(k_src, (E,), 0, N, jnp.int32),
        jax.random.randint(k_tgt, (E,), 0, N, jnp.int32),
    ], axis=0)

    params = {
        "g":     0.1 * jax.random.normal(k_g, (F_IN, KSIZE * F_OUT), jnp.float32),
        "mu":    jax.random.normal(k_mu, (KSIZE, ATTR_D), jnp.float32),
        "sigma": 1.0 + 0.1 * jax.random.normal(k_sig, (KSIZE, ATTR_D), jnp.float32),
        "root":  0.1 * jax.random.normal(k_root, (F_IN, F_OUT), jnp.float32),
        "bias":  0.1 * jax.random.normal(k_bias, (F_OUT,), jnp.float32),
    }

    ref = gmm_resblock_reference(x, edge_index, edge_attr, params)

    # Small tiles -> multi-tile grid (exercises skipping, boundary edge blocks,
    # data-dependent index_map).  f32 MXU operands: tight structural check.
    out_f32 = gmm_resblock(x, edge_index, edge_attr, params,
                           tile_n=64, tile_e=128, matmul_dtype=jnp.float32)
    out_f32 = jax.block_until_ready(out_f32)
    assert out_f32.shape == (N, F_OUT)
    assert jnp.allclose(out_f32, ref, atol=1e-3, rtol=1e-3), "f32 mismatch vs reference"

    # bf16 MXU operands with f32 accumulation, multi-tile grid.
    out_bf16 = gmm_resblock(x, edge_index, edge_attr, params,
                            tile_n=64, tile_e=128, matmul_dtype=jnp.bfloat16)
    out_bf16 = jax.block_until_ready(out_bf16)
    assert jnp.allclose(out_bf16, ref, atol=2e-2, rtol=2e-2), "bf16 mismatch vs reference"

    # Default (large) production tiles -> single-tile degenerate grid path.
    out_big = gmm_resblock(x, edge_index, edge_attr, params,
                           matmul_dtype=jnp.bfloat16)
    out_big = jax.block_until_ready(out_big)
    assert jnp.allclose(out_big, ref, atol=2e-2, rtol=2e-2), "big-tile mismatch vs reference"

    print("KERNEL_OK")
</pallas_src>

<mosaic_0001>
module attributes {stable_mosaic.version = 11 : i64} {
  func.func @_gmm_resblock_kernel(%arg0: i32, %arg1: i32, %arg2: memref<4xi32, #tpu.memory_space<smem>>, %arg3: memref<4xi32, #tpu.memory_space<smem>>, %arg4: memref<128x8xf32, #tpu.memory_space<vmem>>, %arg5: memref<128x3xf32, #tpu.memory_space<vmem>>, %arg6: memref<1x128xi32, #tpu.memory_space<vmem>>, %arg7: memref<64x8xf32, #tpu.memory_space<vmem>>, %arg8: memref<64x1xf32, #tpu.memory_space<vmem>>, %arg9: memref<24x128xf32, #tpu.memory_space<vmem>>, %arg10: memref<8x128xf32, #tpu.memory_space<vmem>>, %arg11: memref<1x128xf32, #tpu.memory_space<vmem>>, %arg12: memref<64x8xf32, #tpu.memory_space<vmem>>, %arg13: memref<64x128xf32, #tpu.memory_space<vmem>>) attributes {dimension_semantics = [#tpu.dimension_semantics<parallel>, #tpu.dimension_semantics<arbitrary>], iteration_bounds = array<i64: 4, 3>, scalar_prefetch = 2 : i64, scratch_operands = 1 : i64, tpu.core_type = #tpu.core_type<tc>, window_params = [{transform_indices = @transform_0, window_bounds = array<i64: 128, 8>}, {transform_indices = @transform_1, window_bounds = array<i64: 128, 3>}, {transform_indices = @transform_2, window_bounds = array<i64: 1, 128>}, {transform_indices = @transform_3, window_bounds = array<i64: 64, 8>}, {transform_indices = @transform_4, window_bounds = array<i64: 64, 1>}, {pipeline_mode = #tpu.pipeline_mode<synchronous>, transform_indices = @transform_5, window_bounds = array<i64: 24, 128>}, {pipeline_mode = #tpu.pipeline_mode<synchronous>, transform_indices = @transform_6, window_bounds = array<i64: 8, 128>}, {pipeline_mode = #tpu.pipeline_mode<synchronous>, transform_indices = @transform_7, window_bounds = array<i64: 1, 128>}, {transform_indices = @transform_8, window_bounds = array<i64: 64, 8>}]} {
    %c0_i32 = arith.constant 0 : i32
    %0 = arith.cmpi eq, %arg1, %c0_i32 : i32
    %1 = arith.extui %0 : i1 to i32
    %c0_i32_0 = arith.constant 0 : i32
    %2 = arith.cmpi ne, %1, %c0_i32_0 : i32
    scf.if %2 {
      %cst = arith.constant 0.000000e+00 : f32
      %11 = vector.broadcast %cst : f32 to vector<64x128xf32>
      %c0 = arith.constant 0 : index
      %c0_3 = arith.constant 0 : index
      %12 = vector.load %arg13[%c0, %c0_3] : memref<64x128xf32, #tpu.memory_space<vmem>>, vector<64x128xf32>
      tpu.vector_store %arg13[%c0, %c0_3], %11 {strides = array<i32>} : memref<64x128xf32, #tpu.memory_space<vmem>>, vector<64x128xf32>,
    } else {
    }
    %3 = arith.index_cast %arg0 : i32 to index
    %4 = memref.load %arg3[%3] : memref<4xi32, #tpu.memory_space<smem>>
    %5 = arith.cmpi slt, %arg1, %4 : i32
    %6 = arith.extui %5 : i1 to i32
    %c0_i32_1 = arith.constant 0 : i32
    %7 = arith.cmpi ne, %6, %c0_i32_1 : i32
    scf.if %7 {
      %c0 = arith.constant 0 : index
      %c0_3 = arith.constant 0 : index
      %11 = vector.load %arg4[%c0, %c0_3] : memref<128x8xf32, #tpu.memory_space<vmem>>, vector<128x8xf32>
      %c0_4 = arith.constant 0 : index
      %c0_5 = arith.constant 0 : index
      %12 = vector.load %arg5[%c0_4, %c0_5] : memref<128x3xf32, #tpu.memory_space<vmem>>, vector<128x3xf32>
      %c0_6 = arith.constant 0 : index
      %c0_7 = arith.constant 0 : index
      %13 = vector.load %arg6[%c0_6, %c0_7] : memref<1x128xi32, #tpu.memory_space<vmem>>, vector<1x128xi32>
      %14 = vector.extract_strided_slice %12 {offsets = [0, 0], sizes = [128, 1], strides = [1, 1]} : vector<128x3xf32> to vector<128x1xf32>
      %15 = vector.broadcast %14 : vector<128x1xf32> to vector<128x8xf32>
      %16 = arith.mulf %15, %11 : vector<128x8xf32>
      %17 = vector.extract_strided_slice %12 {offsets = [0, 1], sizes = [128, 1], strides = [1, 1]} : vector<128x3xf32> to vector<128x1xf32>
      %18 = vector.broadcast %17 : vector<128x1xf32> to vector<128x8xf32>
      %19 = arith.mulf %18, %11 : vector<128x8xf32>
      %20 = vector.extract_strided_slice %12 {offsets = [0, 2], sizes = [128, 1], strides = [1, 1]} : vector<128x3xf32> to vector<128x1xf32>
      %21 = vector.broadcast %20 : vector<128x1xf32> to vector<128x8xf32>
      %22 = arith.mulf %21, %11 : vector<128x8xf32>
      %23 = tpu.concatenate %16, %19, %22 in 1 : vector<128x8xf32>, vector<128x8xf32>, vector<128x8xf32> -> vector<128x24xf32>
      %c0_8 = arith.constant 0 : index
      %c0_9 = arith.constant 0 : index
      %24 = vector.load %arg9[%c0_8, %c0_9] : memref<24x128xf32, #tpu.memory_space<vmem>>, vector<24x128xf32>
      %cst = arith.constant dense<0.000000e+00> : vector<128x128xf32>
      %25 = tpu.matmul %23, %24, %cst {dimension_numbers = #tpu.dot_dimension_numbers<[1], [0], [0], [1], [0, 0, 1, 1], [], []>} : vector<128x24xf32>, vector<24x128xf32>, vector<128x128xf32> -> vector<128x128xf32>
      %c64_i32 = arith.constant 64 : i32
      %26 = arith.muli %arg0, %c64_i32 : i32
      %27 = vector.broadcast %26 : i32 to vector<1x128xi32>
      %28 = arith.subi %13, %27 : vector<1x128xi32>
      %29 = tpu.iota {dimensions = array<i32: 0>} : vector<64x128xi32>
      %30 = vector.broadcast %28 : vector<1x128xi32> to vector<64x128xi32>
      %31 = arith.cmpi eq, %29, %30 : vector<64x128xi32>
      %32 = arith.extui %31 : vector<64x128xi1> to vector<64x128xi32>
      %33 = arith.sitofp %32 : vector<64x128xi32> to vector<64x128xf32>
      %c0_10 = arith.constant 0 : index
      %c0_11 = arith.constant 0 : index
      %34 = vector.load %arg13[%c0_10, %c0_11] : memref<64x128xf32, #tpu.memory_space<vmem>>, vector<64x128xf32>
      %cst_12 = arith.constant dense<0.000000e+00> : vector<64x128xf32>
      %35 = tpu.matmul %33, %25, %cst_12 {dimension_numbers = #tpu.dot_dimension_numbers<[1], [0], [0], [1], [0, 0, 1, 1], [], []>} : vector<64x128xf32>, vector<128x128xf32>, vector<64x128xf32> -> vector<64x128xf32>
      %36 = arith.addf %34, %35 : vector<64x128xf32>
      %c0_13 = arith.constant 0 : index
      %c0_14 = arith.constant 0 : index
      %37 = vector.load %arg13[%c0_13, %c0_14] : memref<64x128xf32, #tpu.memory_space<vmem>>, vector<64x128xf32>
      tpu.vector_store %arg13[%c0_13, %c0_14], %36 {strides = array<i32>} : memref<64x128xf32, #tpu.memory_space<vmem>>, vector<64x128xf32>,
    } else {
    }
    %c2_i32 = arith.constant 2 : i32
    %8 = arith.cmpi eq, %arg1, %c2_i32 : i32
    %9 = arith.extui %8 : i1 to i32
    %c0_i32_2 = arith.constant 0 : i32
    %10 = arith.cmpi ne, %9, %c0_i32_2 : i32
    scf.if %10 {
      %c0 = arith.constant 0 : index
      %c0_3 = arith.constant 0 : index
      %11 = vector.load %arg7[%c0, %c0_3] : memref<64x8xf32, #tpu.memory_space<vmem>>, vector<64x8xf32>
      %c0_4 = arith.constant 0 : index
      %c0_5 = arith.constant 0 : index
      %12 = vector.load %arg13[%c0_4, %c0_5] : memref<64x128xf32, #tpu.memory_space<vmem>>, vector<64x128xf32>
      %c0_6 = arith.constant 0 : index
      %c0_7 = arith.constant 0 : index
      %13 = vector.load %arg8[%c0_6, %c0_7] : memref<64x1xf32, #tpu.memory_space<vmem>>, vector<64x1xf32>
      %14 = vector.broadcast %13 : vector<64x1xf32> to vector<64x128xf32>
      %15 = arith.mulf %12, %14 : vector<64x128xf32>
      %c0_8 = arith.constant 0 : index
      %c0_9 = arith.constant 0 : index
      %16 = vector.load %arg10[%c0_8, %c0_9] : memref<8x128xf32, #tpu.memory_space<vmem>>, vector<8x128xf32>
      %cst = arith.constant dense<0.000000e+00> : vector<64x128xf32>
      %17 = tpu.matmul %11, %16, %cst {dimension_numbers = #tpu.dot_dimension_numbers<[1], [0], [0], [1], [0, 0, 1, 1], [], []>} : vector<64x8xf32>, vector<8x128xf32>, vector<64x128xf32> -> vector<64x128xf32>
      %18 = arith.addf %15, %17 : vector<64x128xf32>
      %c0_10 = arith.constant 0 : index
      %c0_11 = arith.constant 0 : index
      %19 = vector.load %arg11[%c0_10, %c0_11] : memref<1x128xf32, #tpu.memory_space<vmem>>, vector<1x128xf32>
      %20 = vector.broadcast %19 : vector<1x128xf32> to vector<64x128xf32>
      %21 = arith.addf %18, %20 : vector<64x128xf32>
      %22 = arith.negf %21 : vector<64x128xf32>
      %23 = math.exp %22 : vector<64x128xf32>
      %cst_12 = arith.constant 1.000000e+00 : f32
      %24 = vector.broadcast %cst_12 : f32 to vector<64x128xf32>
      %25 = arith.addf %24, %23 : vector<64x128xf32>
      %26 = arith.divf %24, %25 : vector<64x128xf32>
      %27 = arith.mulf %21, %26 : vector<64x128xf32>
      %28 = vector.extract_strided_slice %27 {offsets = [0, 0], sizes = [64, 8], strides = [1, 1]} : vector<64x128xf32> to vector<64x8xf32>
      %c0_13 = arith.constant 0 : index
      %c0_14 = arith.constant 0 : index
      %29 = vector.load %arg12[%c0_13, %c0_14] : memref<64x8xf32, #tpu.memory_space<vmem>>, vector<64x8xf32>
      tpu.vector_store %arg12[%c0_13, %c0_14], %28 {strides = array<i32>} : memref<64x8xf32, #tpu.memory_space<vmem>>, vector<64x8xf32>,
    } else {
    }
    return
  }
  func.func @transform_0(%arg0: i32, %arg1: i32, %arg2: memref<4xi32, #tpu.memory_space<smem>>, %arg3: memref<4xi32, #tpu.memory_space<smem>>) -> (i32, i32) {
    %0 = arith.index_cast %arg0 : i32 to index
    %1 = memref.load %arg3[%0] : memref<4xi32, #tpu.memory_space<smem>>
    %c1_i32 = arith.constant 1 : i32
    %2 = arith.subi %1, %c1_i32 : i32
    %c0_i32 = arith.constant 0 : i32
    %3 = arith.maxsi %2, %c0_i32 : i32
    %4 = arith.minsi %arg1, %3 : i32
    %5 = arith.index_cast %arg0 : i32 to index
    %6 = memref.load %arg2[%5] : memref<4xi32, #tpu.memory_space<smem>>
    %7 = arith.addi %6, %4 : i32
    %c6_i32 = arith.constant 6 : i32
    %8 = arith.minsi %7, %c6_i32 : i32
    %c0_i32_0 = arith.constant 0 : i32
    %c0_i32_1 = arith.constant 0 : i32
    return %8, %c0_i32_0 : i32, i32
  }
  func.func @transform_1(%arg0: i32, %arg1: i32, %arg2: memref<4xi32, #tpu.memory_space<smem>>, %arg3: memref<4xi32, #tpu.memory_space<smem>>) -> (i32, i32) {
    %0 = arith.index_cast %arg0 : i32 to index
    %1 = memref.load %arg3[%0] : memref<4xi32, #tpu.memory_space<smem>>
    %c1_i32 = arith.constant 1 : i32
    %2 = arith.subi %1, %c1_i32 : i32
    %c0_i32 = arith.constant 0 : i32
    %3 = arith.maxsi %2, %c0_i32 : i32
    %4 = arith.minsi %arg1, %3 : i32
    %5 = arith.index_cast %arg0 : i32 to index
    %6 = memref.load %arg2[%5] : memref<4xi32, #tpu.memory_space<smem>>
    %7 = arith.addi %6, %4 : i32
    %c6_i32 = arith.constant 6 : i32
    %8 = arith.minsi %7, %c6_i32 : i32
    %c0_i32_0 = arith.constant 0 : i32
    %c0_i32_1 = arith.constant 0 : i32
    return %8, %c0_i32_0 : i32, i32
  }
  func.func @transform_2(%arg0: i32, %arg1: i32, %arg2: memref<4xi32, #tpu.memory_space<smem>>, %arg3: memref<4xi32, #tpu.memory_space<smem>>) -> (i32, i32) {
    %0 = arith.index_cast %arg0 : i32 to index
    %1 = memref.load %arg3[%0] : memref<4xi32, #tpu.memory_space<smem>>
    %c1_i32 = arith.constant 1 : i32
    %2 = arith.subi %1, %c1_i32 : i32
    %c0_i32 = arith.constant 0 : i32
    %3 = arith.maxsi %2, %c0_i32 : i32
    %4 = arith.minsi %arg1, %3 : i32
    %5 = arith.index_cast %arg0 : i32 to index
    %6 = memref.load %arg2[%5] : memref<4xi32, #tpu.memory_space<smem>>
    %7 = arith.addi %6, %4 : i32
    %c6_i32 = arith.constant 6 : i32
    %8 = arith.minsi %7, %c6_i32 : i32
    %c0_i32_0 = arith.constant 0 : i32
    %c0_i32_1 = arith.constant 0 : i32
    return %c0_i32_0, %8 : i32, i32
  }
  func.func @transform_3(%arg0: i32, %arg1: i32, %arg2: memref<4xi32, #tpu.memory_space<smem>>, %arg3: memref<4xi32, #tpu.memory_space<smem>>) -> (i32, i32) {
    %c0_i32 = arith.constant 0 : i32
    %c0_i32_0 = arith.constant 0 : i32
    return %arg0, %c0_i32 : i32, i32
  }
  func.func @transform_4(%arg0: i32, %arg1: i32, %arg2: memref<4xi32, #tpu.memory_space<smem>>, %arg3: memref<4xi32, #tpu.memory_space<smem>>) -> (i32, i32) {
    %c0_i32 = arith.constant 0 : i32
    %c0_i32_0 = arith.constant 0 : i32
    return %arg0, %c0_i32 : i32, i32
  }
  func.func @transform_5(%arg0: i32, %arg1: i32, %arg2: memref<4xi32, #tpu.memory_space<smem>>, %arg3: memref<4xi32, #tpu.memory_space<smem>>) -> (i32, i32) {
    %c0_i32 = arith.constant 0 : i32
    %c0_i32_0 = arith.constant 0 : i32
    %c0_i32_1 = arith.constant 0 : i32
    return %c0_i32, %c0_i32_0 : i32, i32
  }
  func.func @transform_6(%arg0: i32, %arg1: i32, %arg2: memref<4xi32, #tpu.memory_space<smem>>, %arg3: memref<4xi32, #tpu.memory_space<smem>>) -> (i32, i32) {
    %c0_i32 = arith.constant 0 : i32
    %c0_i32_0 = arith.constant 0 : i32
    %c0_i32_1 = arith.constant 0 : i32
    return %c0_i32, %c0_i32_0 : i32, i32
  }
  func.func @transform_7(%arg0: i32, %arg1: i32, %arg2: memref<4xi32, #tpu.memory_space<smem>>, %arg3: memref<4xi32, #tpu.memory_space<smem>>) -> (i32, i32) {
    %c0_i32 = arith.constant 0 : i32
    %c0_i32_0 = arith.constant 0 : i32
    %c0_i32_1 = arith.constant 0 : i32
    return %c0_i32, %c0_i32_0 : i32, i32
  }
  func.func @transform_8(%arg0: i32, %arg1: i32, %arg2: memref<4xi32, #tpu.memory_space<smem>>, %arg3: memref<4xi32, #tpu.memory_space<smem>>) -> (i32, i32) {
    %c0_i32 = arith.constant 0 : i32
    %c0_i32_0 = arith.constant 0 : i32
    return %arg0, %c0_i32 : i32, i32
  }
}

</mosaic_0001>

<llo_original>
// kernel: tpu_custom_call.1
$region0: #{tpu_custom_call.1}
  #allocation0 [shape = 'u32[]', space=smem, size = 0x4, offset = 0x4, fixed_abs, tag = 'smem constant byte address 0x4 - core index']
  #allocation1 [shape = 'u32[144,128]{1,0:T(1,128)}', space=vmem, size = 0x12000, scoped, tag = 'internal scratch']
  #allocation2 [shape = 'f32[64,128]{1,0:T(8,128)}', space=vmem, size = 0x8000, scoped, tag = 'scratch operand']
  #allocation3 [shape = 's32[1]{0}', space=sflag, size = 0x4, scoped, tag = 'scoped memory for tpu_custom_call.1']
  #allocation4 [shape = 'u8[512]{0}', space=smem, size = 0x200, scoped, tag = 'prefetched SMEM operand 0']
  #allocation5 [shape = 'u8[512]{0}', space=smem, size = 0x200, scoped, tag = 'prefetched SMEM operand 1']
  %s0 = inlined_call_operand.vmem [shape: s32[4], index: 0, kind: input, shape index: {}]
  %s1 = inlined_call_operand.vmem [shape: s32[4], index: 1, kind: input, shape index: {}]
  %s2 = inlined_call_operand.vmem [shape: f32[896,8], index: 2, kind: input, shape index: {}]
  %s3 = inlined_call_operand.vmem [shape: f32[896,3], index: 3, kind: input, shape index: {}]
  %s4 = inlined_call_operand.vmem [shape: s32[1,896], index: 4, kind: input, shape index: {}]
  %s5 = inlined_call_operand.vmem [shape: f32[256,8], index: 5, kind: input, shape index: {}]
  %s6 = inlined_call_operand.vmem [shape: f32[256,1], index: 6, kind: input, shape index: {}]
  %s7 = inlined_call_operand.vmem [shape: f32[24,128], index: 7, kind: input, shape index: {}]
  %s8 = inlined_call_operand.vmem [shape: f32[8,128], index: 8, kind: input, shape index: {}]
  %s9 = inlined_call_operand.vmem [shape: f32[1,128], index: 9, kind: input, shape index: {}]
  %s10 = inlined_call_operand.vmem [shape: f32[256,8], index: 10, kind: output, shape index: {}]
  %s11 = sld [smem:[#allocation0]]
  $region77: #{tpu_custom_call.1} parent=0
    _
  %s13 = ssub.s32 1, %s11
  %s14 = scalar_select 0, %s13, %s11
  %s15 = sshll.u32 %s0, 4
  %s16 = int_to_ptr.vmem [resolvable:$true] %s15
  %18 = dma.vmem_to_smem %s16, 16, [#allocation4], [#allocation3]
  %s19 = sshll.u32 %s1, 4
  %s20 = int_to_ptr.vmem [resolvable:$true] %s19
  %22 = dma.vmem_to_smem %s20, 16, [#allocation5], [#allocation3]
  %23 = dma.done [#allocation3], 32
  %24 = sfence
  loop: start=0, step=1, limit=14
  $region2: #{tpu_custom_call.1} parent=0 // loop_pre_header
    _
  $region3: #{tpu_custom_call.1} parent=0 // loop_header
    %s26 = sphi 0, %s30
    %p27 = scmp.ge.s32.totalorder %s26, 14
    %s33 = sphi 0, %s45
    %s34 = sphi 0, %s41
    %s35 = sphi 0, %s33
    %s36 = sphi 0, %s34
    %s37 = sphi 0, %s35
    %s38 = sphi 0, %s36
    %s68 = sphi 0, %s70
    %s71 = sphi 0, %s68
    %s72 = sphi 0, %s71
    %s88 = sphi 0, %s72
    %s114 = sphi 0, %s116
    %s117 = sphi 0, %s114
    %s118 = sphi 0, %s117
    %s134 = sphi 0, %s118
    %s160 = sphi 0, %s162
    %s163 = sphi 0, %s160
    %s164 = sphi 0, %s163
    %s180 = sphi 0, %s164
    %s186 = sphi 0, %s188
    %s189 = sphi 0, %s186
    %s190 = sphi 0, %s189
    %s206 = sphi 0, %s190
    %s212 = sphi 0, %s214
    %s215 = sphi 0, %s212
    %s216 = sphi 0, %s215
    %s232 = sphi 0, %s216
    %s236 = sphi 0, %s236
    %s238 = sphi 0, %s236
    %s239 = sphi 0, %s238
    %s253 = sphi 0, %s239
    %s257 = sphi 0, %s257
    %s259 = sphi 0, %s257
    %s260 = sphi 0, %s259
    %s274 = sphi 0, %s260
    %s278 = sphi 0, %s278
    %s280 = sphi 0, %s278
    %s281 = sphi 0, %s280
    %s295 = sphi 0, %s281
    %s301 = sphi 0, %s303
    %s304 = sphi 0, %s301
    %s305 = sphi 0, %s304
    %s321 = sphi 0, %s305
  $region4: #{tpu_custom_call.1} parent=0 // loop_header_branch
    %29 = sbr.rel (%p27) target = $region8
  $region5: #{tpu_custom_call.1} parent=0 // loop_body
    %s31 = ssub.s32 %s26, 1
    %s32 = ssub.s32 %s26, 2
    %s39 = sadd.s32 1, %s34
    %p40 = scmp.ge.s32.totalorder %s39, 3
    %s41 = scalar_select %p40, 0, %s39
    %s42 = sadd.s32 1, %s33
    %s43 = scalar_select %p40, %s42, %s33
    %p44 = scmp.ge.s32.totalorder %s43, 4
    %s45 = scalar_select %p44, 0, %s43
    %s46 = sld [smem:[#allocation5 + %s33]]
    %s47 = ssub.s32 %s46, 1
    %p48 = scmp.gt.s32.totalorder %s47, 0
    %s49 = scalar_select %p48, %s47, 0
    %p50 = scmp.lt.s32.totalorder %s34, %s49
    %s51 = scalar_select %p50, %s34, %s49
    %s52 = sld [smem:[#allocation4 + %s33]]
    %s53 = sadd.s32 %s52, %s51
    %p54 = scmp.lt.s32.totalorder %s53, 6
    %s55 = scalar_select %p54, %s53, 6
    %s56 = sld [smem:[#allocation5 + %s45]]
    %s57 = ssub.s32 %s56, 1
    %p58 = scmp.gt.s32.totalorder %s57, 0
    %s59 = scalar_select %p58, %s57, 0
    %p60 = scmp.lt.s32.totalorder %s41, %s59
    %s61 = scalar_select %p60, %s41, %s59
    %s62 = sld [smem:[#allocation4 + %s45]]
    %s63 = sadd.s32 %s62, %s61
    %p64 = scmp.lt.s32.totalorder %s63, 6
    %s65 = scalar_select %p64, %s63, 6
    %s66 = ssub.s32 %s55, %s65
    %p67 = scmp.eq.s32.totalorder %s66, 0
    %s69 = sadd.s32 %s68, 1
    %s70 = scalar_select %p67, %s68, %s69
    %p73 = pneg %p67
    %p74 = scmp.eq.s32.totalorder %s26, 11
    %p75 = por %p73, %p74
    %p76 = scmp.ne.s32.totalorder %s68, %s71
    %p77 = scmp.eq.s32.totalorder %s26, 0
    %p78 = por %p76, %p77
    %p79 = scmp.ne.s32.totalorder %s68, %s71
    %p80 = scmp.eq.s32.totalorder %s31, 11
    %p81 = por %p79, %p80
    %p82 = scmp.ne.s32.totalorder %s71, %s72
    %p83 = scmp.eq.s32.totalorder %s31, 0
    %p84 = por %p82, %p83
    %p85 = scmp.ne.s32.totalorder %s71, %s72
    %p86 = scmp.eq.s32.totalorder %s32, 11
    %p87 = por %p85, %p86
    %p89 = scmp.ne.s32.totalorder %s72, %s88
    %p90 = scmp.eq.s32.totalorder %s32, 0
    %p91 = por %p89, %p90
    %s92 = sld [smem:[#allocation5 + %s33]]
    %s93 = ssub.s32 %s92, 1
    %p94 = scmp.gt.s32.totalorder %s93, 0
    %s95 = scalar_select %p94, %s93, 0
    %p96 = scmp.lt.s32.totalorder %s34, %s95
    %s97 = scalar_select %p96, %s34, %s95
    %s98 = sld [smem:[#allocation4 + %s33]]
    %s99 = sadd.s32 %s98, %s97
    %p100 = scmp.lt.s32.totalorder %s99, 6
    %s101 = scalar_select %p100, %s99, 6
    %s102 = sld [smem:[#allocation5 + %s45]]
    %s103 = ssub.s32 %s102, 1
    %p104 = scmp.gt.s32.totalorder %s103, 0
    %s105 = scalar_select %p104, %s103, 0
    %p106 = scmp.lt.s32.totalorder %s41, %s105
    %s107 = scalar_select %p106, %s41, %s105
    %s108 = sld [smem:[#allocation4 + %s45]]
    %s109 = sadd.s32 %s108, %s107
    %p110 = scmp.lt.s32.totalorder %s109, 6
    %s111 = scalar_select %p110, %s109, 6
    %s112 = ssub.s32 %s101, %s111
    %p113 = scmp.eq.s32.totalorder %s112, 0
    %s115 = sadd.s32 %s114, 1
    %s116 = scalar_select %p113, %s114, %s115
    %p119 = pneg %p113
    %p120 = scmp.eq.s32.totalorder %s26, 11
    %p121 = por %p119, %p120
    %p122 = scmp.ne.s32.totalorder %s114, %s117
    %p123 = scmp.eq.s32.totalorder %s26, 0
    %p124 = por %p122, %p123
    %p125 = scmp.ne.s32.totalorder %s114, %s117
    %p126 = scmp.eq.s32.totalorder %s31, 11
    %p127 = por %p125, %p126
    %p128 = scmp.ne.s32.totalorder %s117, %s118
    %p129 = scmp.eq.s32.totalorder %s31, 0
    %p130 = por %p128, %p129
    %p131 = scmp.ne.s32.totalorder %s117, %s118
    %p132 = scmp.eq.s32.totalorder %s32, 11
    %p133 = por %p131, %p132
    %p135 = scmp.ne.s32.totalorder %s118, %s134
    %p136 = scmp.eq.s32.totalorder %s32, 0
    %p137 = por %p135, %p136
    %s138 = sld [smem:[#allocation5 + %s33]]
    %s139 = ssub.s32 %s138, 1
    %p140 = scmp.gt.s32.totalorder %s139, 0
    %s141 = scalar_select %p140, %s139, 0
    %p142 = scmp.lt.s32.totalorder %s34, %s141
    %s143 = scalar_select %p142, %s34, %s141
    %s144 = sld [smem:[#allocation4 + %s33]]
    %s145 = sadd.s32 %s144, %s143
    %p146 = scmp.lt.s32.totalorder %s145, 6
    %s147 = scalar_select %p146, %s145, 6
    %s148 = sld [smem:[#allocation5 + %s45]]
    %s149 = ssub.s32 %s148, 1
    %p150 = scmp.gt.s32.totalorder %s149, 0
    %s151 = scalar_select %p150, %s149, 0
    %p152 = scmp.lt.s32.totalorder %s41, %s151
    %s153 = scalar_select %p152, %s41, %s151
    %s154 = sld [smem:[#allocation4 + %s45]]
    %s155 = sadd.s32 %s154, %s153
    %p156 = scmp.lt.s32.totalorder %s155, 6
    %s157 = scalar_select %p156, %s155, 6
    %s158 = ssub.s32 %s147, %s157
    %p159 = scmp.eq.s32.totalorder %s158, 0
    %s161 = sadd.s32 %s160, 1
    %s162 = scalar_select %p159, %s160, %s161
    %p165 = pneg %p159
    %p166 = scmp.eq.s32.totalorder %s26, 11
    %p167 = por %p165, %p166
    %p168 = scmp.ne.s32.totalorder %s160, %s163
    %p169 = scmp.eq.s32.totalorder %s26, 0
    %p170 = por %p168, %p169
    %p171 = scmp.ne.s32.totalorder %s160, %s163
    %p172 = scmp.eq.s32.totalorder %s31, 11
    %p173 = por %p171, %p172
    %p174 = scmp.ne.s32.totalorder %s163, %s164
    %p175 = scmp.eq.s32.totalorder %s31, 0
    %p176 = por %p174, %p175
    %p177 = scmp.ne.s32.totalorder %s163, %s164
    %p178 = scmp.eq.s32.totalorder %s32, 11
    %p179 = por %p177, %p178
    %p181 = scmp.ne.s32.totalorder %s164, %s180
    %p182 = scmp.eq.s32.totalorder %s32, 0
    %p183 = por %p181, %p182
    %s184 = ssub.s32 %s33, %s45
    %p185 = scmp.eq.s32.totalorder %s184, 0
    %s187 = sadd.s32 %s186, 1
    %s188 = scalar_select %p185, %s186, %s187
    %p191 = pneg %p185
    %p192 = scmp.eq.s32.totalorder %s26, 11
    %p193 = por %p191, %p192
    %p194 = scmp.ne.s32.totalorder %s186, %s189
    %p195 = scmp.eq.s32.totalorder %s26, 0
    %p196 = por %p194, %p195
    %p197 = scmp.ne.s32.totalorder %s186, %s189
    %p198 = scmp.eq.s32.totalorder %s31, 11
    %p199 = por %p197, %p198
    %p200 = scmp.ne.s32.totalorder %s189, %s190
    %p201 = scmp.eq.s32.totalorder %s31, 0
    %p202 = por %p200, %p201
    %p203 = scmp.ne.s32.totalorder %s189, %s190
    %p204 = scmp.eq.s32.totalorder %s32, 11
    %p205 = por %p203, %p204
    %p207 = scmp.ne.s32.totalorder %s190, %s206
    %p208 = scmp.eq.s32.totalorder %s32, 0
    %p209 = por %p207, %p208
    %s210 = ssub.s32 %s33, %s45
    %p211 = scmp.eq.s32.totalorder %s210, 0
    %s213 = sadd.s32 %s212, 1
    %s214 = scalar_select %p211, %s212, %s213
    %p217 = pneg %p211
    %p218 = scmp.eq.s32.totalorder %s26, 11
    %p219 = por %p217, %p218
    %p220 = scmp.ne.s32.totalorder %s212, %s215
    %p221 = scmp.eq.s32.totalorder %s26, 0
    %p222 = por %p220, %p221
    %p223 = scmp.ne.s32.totalorder %s212, %s215
    %p224 = scmp.eq.s32.totalorder %s31, 11
    %p225 = por %p223, %p224
    %p226 = scmp.ne.s32.totalorder %s215, %s216
    %p227 = scmp.eq.s32.totalorder %s31, 0
    %p228 = por %p226, %p227
    %p229 = scmp.ne.s32.totalorder %s215, %s216
    %p230 = scmp.eq.s32.totalorder %s32, 11
    %p231 = por %p229, %p230
    %p233 = scmp.ne.s32.totalorder %s216, %s232
    %p234 = scmp.eq.s32.totalorder %s32, 0
    %p235 = por %p233, %p234
    %s237 = sadd.s32 %s236, 1
    %p240 = scmp.eq.s32.totalorder %s26, 11
    %p241 = scmp.ne.s32.totalorder %s236, %s238
    %p242 = scmp.eq.s32.totalorder %s26, 0
    %p243 = por %p241, %p242
    %p244 = scmp.ne.s32.totalorder %s236, %s238
    %p245 = scmp.eq.s32.totalorder %s31, 11
    %p246 = por %p244, %p245
    %p247 = scmp.ne.s32.totalorder %s238, %s239
    %p248 = scmp.eq.s32.totalorder %s31, 0
    %p249 = por %p247, %p248
    %p250 = scmp.ne.s32.totalorder %s238, %s239
    %p251 = scmp.eq.s32.totalorder %s32, 11
    %p252 = por %p250, %p251
    %p254 = scmp.ne.s32.totalorder %s239, %s253
    %p255 = scmp.eq.s32.totalorder %s32, 0
    %p256 = por %p254, %p255
    %s258 = sadd.s32 %s257, 1
    %p261 = scmp.eq.s32.totalorder %s26, 11
    %p262 = scmp.ne.s32.totalorder %s257, %s259
    %p263 = scmp.eq.s32.totalorder %s26, 0
    %p264 = por %p262, %p263
    %p265 = scmp.ne.s32.totalorder %s257, %s259
    %p266 = scmp.eq.s32.totalorder %s31, 11
    %p267 = por %p265, %p266
    %p268 = scmp.ne.s32.totalorder %s259, %s260
    %p269 = scmp.eq.s32.totalorder %s31, 0
    %p270 = por %p268, %p269
    %p271 = scmp.ne.s32.totalorder %s259, %s260
    %p272 = scmp.eq.s32.totalorder %s32, 11
    %p273 = por %p271, %p272
    %p275 = scmp.ne.s32.totalorder %s260, %s274
    %p276 = scmp.eq.s32.totalorder %s32, 0
    %p277 = por %p275, %p276
    %s279 = sadd.s32 %s278, 1
    %p282 = scmp.eq.s32.totalorder %s26, 11
    %p283 = scmp.ne.s32.totalorder %s278, %s280
    %p284 = scmp.eq.s32.totalorder %s26, 0
    %p285 = por %p283, %p284
    %p286 = scmp.ne.s32.totalorder %s278, %s280
    %p287 = scmp.eq.s32.totalorder %s31, 11
    %p288 = por %p286, %p287
    %p289 = scmp.ne.s32.totalorder %s280, %s281
    %p290 = scmp.eq.s32.totalorder %s31, 0
    %p291 = por %p289, %p290
    %p292 = scmp.ne.s32.totalorder %s280, %s281
    %p293 = scmp.eq.s32.totalorder %s32, 11
    %p294 = por %p292, %p293
    %p296 = scmp.ne.s32.totalorder %s281, %s295
    %p297 = scmp.eq.s32.totalorder %s32, 0
    %p298 = por %p296, %p297
    %s299 = ssub.s32 %s33, %s45
    %p300 = scmp.eq.s32.totalorder %s299, 0
    %s302 = sadd.s32 %s301, 1
    %s303 = scalar_select %p300, %s301, %s302
    %p306 = pneg %p300
    %p307 = scmp.eq.s32.totalorder %s26, 11
    %p308 = por %p306, %p307
    %p309 = scmp.ne.s32.totalorder %s301, %s304
    %p310 = scmp.eq.s32.totalorder %s26, 0
    %p311 = por %p309, %p310
    %p312 = scmp.ne.s32.totalorder %s301, %s304
    %p313 = scmp.eq.s32.totalorder %s31, 11
    %p314 = por %p312, %p313
    %p315 = scmp.ne.s32.totalorder %s304, %s305
    %p316 = scmp.eq.s32.totalorder %s31, 0
    %p317 = por %p315, %p316
    %p318 = scmp.ne.s32.totalorder %s304, %s305
    %p319 = scmp.eq.s32.totalorder %s32, 11
    %p320 = por %p318, %p319
    %p322 = scmp.ne.s32.totalorder %s305, %s321
    %p323 = scmp.eq.s32.totalorder %s32, 0
    %p324 = por %p322, %p323
    %p325 = scmp.le.s32.totalorder 1, %s26
    %p326 = scmp.lt.s32.totalorder %s26, 13
    %p327 = pnand %p325, %p326
    %p328 = pneg %p327
    // Predicated region
    $region9: #{tpu_custom_call.1} parent=5 // pred_check
      _
    $region10: #{tpu_custom_call.1} parent=5 // pred_check_branch
      %330 = sbr.rel (%p327) target = $region12
    $region11: #{tpu_custom_call.1} parent=5 // pred_region
      %s331 = ssub.s32 %s26, 1
      // Predicated region
      $region13: #{tpu_custom_call.1} parent=11 // pred_check
        %p332 = pneg %p249
      $region14: #{tpu_custom_call.1} parent=11 // pred_check_branch
        %334 = sbr.rel (%p332) target = $region16
      $region15: #{tpu_custom_call.1} parent=11 // pred_region
        _
      $region16: #{tpu_custom_call.1} parent=11 // pred_fallthru
        _
      // Predicated region
      $region17: #{tpu_custom_call.1} parent=11 // pred_check
        %p335 = pneg %p270
      $region18: #{tpu_custom_call.1} parent=11 // pred_check_branch
        %337 = sbr.rel (%p335) target = $region20
      $region19: #{tpu_custom_call.1} parent=11 // pred_region
        _
      $region20: #{tpu_custom_call.1} parent=11 // pred_fallthru
        _
      // Predicated region
      $region21: #{tpu_custom_call.1} parent=11 // pred_check
        %p338 = pneg %p291
      $region22: #{tpu_custom_call.1} parent=11 // pred_check_branch
        %340 = sbr.rel (%p338) target = $region24
      $region23: #{tpu_custom_call.1} parent=11 // pred_region
        _
      $region24: #{tpu_custom_call.1} parent=11 // pred_fallthru
        _
    $region12: #{tpu_custom_call.1} parent=5 // pred_fallthru
      _
    %p341 = scmp.lt.s32.totalorder %s26, 12
    // Predicated region
    $region25: #{tpu_custom_call.1} parent=5 // pred_check
      %p342 = pneg %p341
    $region26: #{tpu_custom_call.1} parent=5 // pred_check_branch
      %344 = sbr.rel (%p342) target = $region28
    $region27: #{tpu_custom_call.1} parent=5 // pred_region
      // Predicated region
      $region29: #{tpu_custom_call.1} parent=27 // pred_check
        %p345 = pneg %p78
      $region30: #{tpu_custom_call.1} parent=27 // pred_check_branch
        %347 = sbr.rel (%p345) target = $region32
      $region31: #{tpu_custom_call.1} parent=27 // pred_region
        %s348 = sld [smem:[#allocation5 + %s33]]
        %s349 = ssub.s32 %s348, 1
        %p350 = scmp.gt.s32.totalorder %s349, 0
        %s351 = scalar_select %p350, %s349, 0
        %p352 = scmp.lt.s32.totalorder %s34, %s351
        %s353 = scalar_select %p352, %s34, %s351
        %s354 = sld [smem:[#allocation4 + %s33]]
        %s355 = sadd.s32 %s354, %s353
        %p356 = scmp.lt.s32.totalorder %s355, 6
        %s357 = scalar_select %p356, %s355, 6
        %s358 = smul.u32 16, %s357
        %p359 = scmp.lt.s32.totalorder %s358, 111
        %s360 = scalar_select %p359, %s358, 111
        %s361 = smul.addr %s360, 8
        %s362 = scalar_lea.vmem %s2, %s361
        %s363 = sld [smem:[#allocation5 + %s33]]
        %s364 = ssub.s32 %s363, 1
        %p365 = scmp.gt.s32.totalorder %s364, 0
        %s366 = scalar_select %p365, %s364, 0
        %p367 = scmp.lt.s32.totalorder %s34, %s366
        %s368 = scalar_select %p367, %s34, %s366
        %s369 = sld [smem:[#allocation4 + %s33]]
        %s370 = sadd.s32 %s369, %s368
        %p371 = scmp.lt.s32.totalorder %s370, 6
        %s372 = scalar_select %p371, %s370, 6
        %s373 = smul.u32 16, %s372
      $region32: #{tpu_custom_call.1} parent=27 // pred_fallthru
        _
      // Predicated region
      $region33: #{tpu_custom_call.1} parent=27 // pred_check
        %p374 = pneg %p124
      $region34: #{tpu_custom_call.1} parent=27 // pred_check_branch
        %376 = sbr.rel (%p374) target = $region36
      $region35: #{tpu_custom_call.1} parent=27 // pred_region
        %s377 = sld [smem:[#allocation5 + %s33]]
        %s378 = ssub.s32 %s377, 1
        %p379 = scmp.gt.s32.totalorder %s378, 0
        %s380 = scalar_select %p379, %s378, 0
        %p381 = scmp.lt.s32.totalorder %s34, %s380
        %s382 = scalar_select %p381, %s34, %s380
        %s383 = sld [smem:[#allocation4 + %s33]]
        %s384 = sadd.s32 %s383, %s382
        %p385 = scmp.lt.s32.totalorder %s384, 6
        %s386 = scalar_select %p385, %s384, 6
        %s387 = smul.u32 16, %s386
        %p388 = scmp.lt.s32.totalorder %s387, 111
        %s389 = scalar_select %p388, %s387, 111
        %s390 = smul.addr %s389, 8
        %s391 = scalar_lea.vmem %s3, %s390
        %s392 = sld [smem:[#allocation5 + %s33]]
        %s393 = ssub.s32 %s392, 1
        %p394 = scmp.gt.s32.totalorder %s393, 0
        %s395 = scalar_select %p394, %s393, 0
        %p396 = scmp.lt.s32.totalorder %s34, %s395
        %s397 = scalar_select %p396, %s34, %s395
        %s398 = sld [smem:[#allocation4 + %s33]]
        %s399 = sadd.s32 %s398, %s397
        %p400 = scmp.lt.s32.totalorder %s399, 6
        %s401 = scalar_select %p400, %s399, 6
        %s402 = smul.u32 16, %s401
      $region36: #{tpu_custom_call.1} parent=27 // pred_fallthru
        _
      // Predicated region
      $region37: #{tpu_custom_call.1} parent=27 // pred_check
        %p403 = pneg %p170
      $region38: #{tpu_custom_call.1} parent=27 // pred_check_branch
        %405 = sbr.rel (%p403) target = $region40
      $region39: #{tpu_custom_call.1} parent=27 // pred_region
        %s406 = sld [smem:[#allocation5 + %s33]]
        %s407 = ssub.s32 %s406, 1
        %p408 = scmp.gt.s32.totalorder %s407, 0
        %s409 = scalar_select %p408, %s407, 0
        %p410 = scmp.lt.s32.totalorder %s34, %s409
        %s411 = scalar_select %p410, %s34, %s409
        %s412 = sld [smem:[#allocation4 + %s33]]
        %s413 = sadd.s32 %s412, %s411
        %p414 = scmp.lt.s32.totalorder %s413, 6
        %s415 = scalar_select %p414, %s413, 6
        %p416 = scmp.lt.s32.totalorder %s415, 6
        %s417 = scalar_select %p416, %s415, 6
        %s418 = scalar_lea.vmem %s4, %s417
        %s419 = sld [smem:[#allocation5 + %s33]]
        %s420 = ssub.s32 %s419, 1
        %p421 = scmp.gt.s32.totalorder %s420, 0
        %s422 = scalar_select %p421, %s420, 0
        %p423 = scmp.lt.s32.totalorder %s34, %s422
        %s424 = scalar_select %p423, %s34, %s422
        %s425 = sld [smem:[#allocation4 + %s33]]
        %s426 = sadd.s32 %s425, %s424
        %p427 = scmp.lt.s32.totalorder %s426, 6
        %s428 = scalar_select %p427, %s426, 6
      $region40: #{tpu_custom_call.1} parent=27 // pred_fallthru
        _
      // Predicated region
      $region41: #{tpu_custom_call.1} parent=27 // pred_check
        %p429 = pneg %p196
      $region42: #{tpu_custom_call.1} parent=27 // pred_check_branch
        %431 = sbr.rel (%p429) target = $region44
      $region43: #{tpu_custom_call.1} parent=27 // pred_region
        %s432 = smul.u32 8, %s33
        %p433 = scmp.lt.s32.totalorder %s432, 31
        %s434 = scalar_select %p433, %s432, 31
        %s435 = smul.addr %s434, 8
        %s436 = scalar_lea.vmem %s5, %s435
        %s437 = smul.u32 8, %s33
      $region44: #{tpu_custom_call.1} parent=27 // pred_fallthru
        _
      // Predicated region
      $region45: #{tpu_custom_call.1} parent=27 // pred_check
        %p438 = pneg %p222
      $region46: #{tpu_custom_call.1} parent=27 // pred_check_branch
        %440 = sbr.rel (%p438) target = $region48
      $region47: #{tpu_custom_call.1} parent=27 // pred_region
        %s441 = smul.u32 8, %s33
        %p442 = scmp.lt.s32.totalorder %s441, 31
        %s443 = scalar_select %p442, %s441, 31
        %s444 = smul.addr %s443, 8
        %s445 = scalar_lea.vmem %s6, %s444
        %s446 = smul.u32 8, %s33
      $region48: #{tpu_custom_call.1} parent=27 // pred_fallthru
        _
    $region28: #{tpu_custom_call.1} parent=5 // pred_fallthru
      _
    %p447 = scmp.le.s32.totalorder 1, %s26
    %p448 = scmp.lt.s32.totalorder %s26, 13
    %p449 = pnand %p447, %p448
    %p450 = pneg %p449
    // Predicated region
    $region49: #{tpu_custom_call.1} parent=5 // pred_check
      _
    $region50: #{tpu_custom_call.1} parent=5 // pred_check_branch
      %452 = sbr.rel (%p449) target = $region52
    $region51: #{tpu_custom_call.1} parent=5 // pred_region
      %s453 = ssub.s32 %s26, 1
      %s454 = sld [smem:[#allocation5 + %s35]]
      %s455 = ssub.s32 %s454, 1
      %p456 = scmp.gt.s32.totalorder %s455, 0
      %s457 = scalar_select %p456, %s455, 0
      %p458 = scmp.lt.s32.totalorder %s36, %s457
      %s459 = scalar_select %p458, %s36, %s457
      %s460 = sld [smem:[#allocation4 + %s35]]
      %s461 = sadd.s32 %s460, %s459
      %p462 = scmp.lt.s32.totalorder %s461, 6
      %s463 = scalar_select %p462, %s461, 6
      %s464 = smul.u32 16, %s463
      %p465 = scmp.lt.s32.totalorder %s464, 111
      %s466 = scalar_select %p465, %s464, 111
      %s467 = smul.addr %s466, 8
      %s468 = scalar_lea.vmem %s2, %s467
      %p469 = pneg %p84
      %p470 = pneg %p81
      %s471 = sld [smem:[#allocation5 + %s35]]
      %s472 = ssub.s32 %s471, 1
      %p473 = scmp.gt.s32.totalorder %s472, 0
      %s474 = scalar_select %p473, %s472, 0
      %p475 = scmp.lt.s32.totalorder %s36, %s474
      %s476 = scalar_select %p475, %s36, %s474
      %s477 = sld [smem:[#allocation4 + %s35]]
      %s478 = sadd.s32 %s477, %s476
      %p479 = scmp.lt.s32.totalorder %s478, 6
      %s480 = scalar_select %p479, %s478, 6
      %s481 = smul.u32 16, %s480
      %p482 = scmp.lt.s32.totalorder %s481, 111
      %s483 = scalar_select %p482, %s481, 111
      %s484 = smul.addr %s483, 8
      %s485 = scalar_lea.vmem %s3, %s484
      %p486 = pneg %p130
      %p487 = pneg %p127
      %s488 = sld [smem:[#allocation5 + %s35]]
      %s489 = ssub.s32 %s488, 1
      %p490 = scmp.gt.s32.totalorder %s489, 0
      %s491 = scalar_select %p490, %s489, 0
      %p492 = scmp.lt.s32.totalorder %s36, %s491
      %s493 = scalar_select %p492, %s36, %s491
      %s494 = sld [smem:[#allocation4 + %s35]]
      %s495 = sadd.s32 %s494, %s493
      %p496 = scmp.lt.s32.totalorder %s495, 6
      %s497 = scalar_select %p496, %s495, 6
      %p498 = scmp.lt.s32.totalorder %s497, 6
      %s499 = scalar_select %p498, %s497, 6
      %s500 = scalar_lea.vmem %s4, %s499
      %p501 = pneg %p176
      %p502 = pneg %p173
      %s503 = smul.u32 8, %s35
      %p504 = scmp.lt.s32.totalorder %s503, 31
      %s505 = scalar_select %p504, %s503, 31
      %s506 = smul.addr %s505, 8
      %s507 = scalar_lea.vmem %s5, %s506
      %p508 = pneg %p202
      %p509 = pneg %p199
      %s510 = smul.u32 8, %s35
      %p511 = scmp.lt.s32.totalorder %s510, 31
      %s512 = scalar_select %p511, %s510, 31
      %s513 = smul.addr %s512, 8
      %s514 = scalar_lea.vmem %s6, %s513
      %p515 = pneg %p228
      %p516 = pneg %p225
      %p517 = pneg %p249
      %p518 = pneg %p246
      %p519 = pneg %p270
      %p520 = pneg %p267
      %p521 = pneg %p291
      %p522 = pneg %p288
      %p523 = pneg %p317
      %p524 = pneg %p314
      %s525 = smul.u32 8, %s35
      %p526 = scmp.lt.s32.totalorder %s525, 31
      %s527 = scalar_select %p526, %s525, 31
      %s528 = smul.addr %s527, 8
      %s529 = scalar_lea.vmem %s10, %s528
      %s530 = sld [smem:[#allocation5 + %s35]]
      %s531 = ssub.s32 %s530, 1
      %p532 = scmp.gt.s32.totalorder %s531, 0
      %s533 = scalar_select %p532, %s531, 0
      %p534 = scmp.lt.s32.totalorder %s36, %s533
      %s535 = scalar_select %p534, %s36, %s533
      %s536 = sld [smem:[#allocation4 + %s35]]
      %s537 = sadd.s32 %s536, %s535
      %p538 = scmp.lt.s32.totalorder %s537, 6
      %s539 = scalar_select %p538, %s537, 6
      %s540 = smul.u32 16, %s539
      %p541 = scmp.lt.s32.totalorder %s540, 111
      %s542 = scalar_select %p541, %s540, 111
      %s543 = smul.addr %s542, 8
      %s544 = scalar_lea.vmem %s2, %s543
      %s545 = sld [smem:[#allocation5 + %s35]]
      %s546 = ssub.s32 %s545, 1
      %p547 = scmp.gt.s32.totalorder %s546, 0
      %s548 = scalar_select %p547, %s546, 0
      %p549 = scmp.lt.s32.totalorder %s36, %s548
      %s550 = scalar_select %p549, %s36, %s548
      %s551 = sld [smem:[#allocation4 + %s35]]
      %s552 = sadd.s32 %s551, %s550
      %p553 = scmp.lt.s32.totalorder %s552, 6
      %s554 = scalar_select %p553, %s552, 6
      %s555 = smul.u32 16, %s554
      %s556 = sld [smem:[#allocation5 + %s35]]
      %s557 = ssub.s32 %s556, 1
      %p558 = scmp.gt.s32.totalorder %s557, 0
      %s559 = scalar_select %p558, %s557, 0
      %p560 = scmp.lt.s32.totalorder %s36, %s559
      %s561 = scalar_select %p560, %s36, %s559
      %s562 = sld [smem:[#allocation4 + %s35]]
      %s563 = sadd.s32 %s562, %s561
      %p564 = scmp.lt.s32.totalorder %s563, 6
      %s565 = scalar_select %p564, %s563, 6
      %s566 = smul.u32 16, %s565
      %p567 = scmp.lt.s32.totalorder %s566, 111
      %s568 = scalar_select %p567, %s566, 111
      %s569 = smul.addr %s568, 8
      %s570 = scalar_lea.vmem %s3, %s569
      %s571 = sld [smem:[#allocation5 + %s35]]
      %s572 = ssub.s32 %s571, 1
      %p573 = scmp.gt.s32.totalorder %s572, 0
      %s574 = scalar_select %p573, %s572, 0
      %p575 = scmp.lt.s32.totalorder %s36, %s574
      %s576 = scalar_select %p575, %s36, %s574
      %s577 = sld [smem:[#allocation4 + %s35]]
      %s578 = sadd.s32 %s577, %s576
      %p579 = scmp.lt.s32.totalorder %s578, 6
      %s580 = scalar_select %p579, %s578, 6
      %s581 = smul.u32 16, %s580
      %s582 = sld [smem:[#allocation5 + %s35]]
      %s583 = ssub.s32 %s582, 1
      %p584 = scmp.gt.s32.totalorder %s583, 0
      %s585 = scalar_select %p584, %s583, 0
      %p586 = scmp.lt.s32.totalorder %s36, %s585
      %s587 = scalar_select %p586, %s36, %s585
      %s588 = sld [smem:[#allocation4 + %s35]]
      %s589 = sadd.s32 %s588, %s587
      %p590 = scmp.lt.s32.totalorder %s589, 6
      %s591 = scalar_select %p590, %s589, 6
      %p592 = scmp.lt.s32.totalorder %s591, 6
      %s593 = scalar_select %p592, %s591, 6
      %s594 = scalar_lea.vmem %s4, %s593
      %s595 = sld [smem:[#allocation5 + %s35]]
      %s596 = ssub.s32 %s595, 1
      %p597 = scmp.gt.s32.totalorder %s596, 0
      %s598 = scalar_select %p597, %s596, 0
      %p599 = scmp.lt.s32.totalorder %s36, %s598
      %s600 = scalar_select %p599, %s36, %s598
      %s601 = sld [smem:[#allocation4 + %s35]]
      %s602 = sadd.s32 %s601, %s600
      %p603 = scmp.lt.s32.totalorder %s602, 6
      %s604 = scalar_select %p603, %s602, 6
      %s605 = smul.u32 8, %s35
      %p606 = scmp.lt.s32.totalorder %s605, 31
      %s607 = scalar_select %p606, %s605, 31
      %s608 = smul.addr %s607, 8
      %s609 = scalar_lea.vmem %s5, %s608
      %s610 = smul.u32 8, %s35
      %s611 = smul.u32 8, %s35
      %p612 = scmp.lt.s32.totalorder %s611, 31
      %s613 = scalar_select %p612, %s611, 31
      %s614 = smul.addr %s613, 8
      %s615 = scalar_lea.vmem %s6, %s614
      %s616 = smul.u32 8, %s35
      %s617 = smul.u32 8, %s35
      %p618 = scmp.lt.s32.totalorder %s617, 31
      %s619 = scalar_select %p618, %s617, 31
      %s620 = smul.addr %s619, 8
      %s621 = scalar_lea.vmem %s10, %s620
      %s622 = smul.u32 8, %s35
      %p623 = scmp.eq.s32.totalorder %s36, 0
      // Predicated region
      $region53: #{tpu_custom_call.1} parent=51 // pred_check
        %p624 = pneg %p623
      $region54: #{tpu_custom_call.1} parent=51 // pred_check_branch
        %626 = sbr.rel (%p624) target = $region56
      $region55: #{tpu_custom_call.1} parent=51 // pred_region
        %627 = vst [vmem:[#allocation2] sm:$0xff] 0.0
        %628 = vst [vmem:[#allocation2 + $0x8] sm:$0xff] 0.0
        %629 = vst [vmem:[#allocation2 + $0x10] sm:$0xff] 0.0
        %630 = vst [vmem:[#allocation2 + $0x18] sm:$0xff] 0.0
        %631 = vst [vmem:[#allocation2 + $0x20] sm:$0xff] 0.0
        %632 = vst [vmem:[#allocation2 + $0x28] sm:$0xff] 0.0
        %633 = vst [vmem:[#allocation2 + $0x30] sm:$0xff] 0.0
        %634 = vst [vmem:[#allocation2 + $0x38] sm:$0xff] 0.0
      $region56: #{tpu_custom_call.1} parent=51 // pred_fallthru
        _
      %s635 = sld [smem:[#allocation5 + %s35]]
      %p636 = scmp.lt.s32.totalorder %s36, %s635
      // Predicated region
      $region57: #{tpu_custom_call.1} parent=51 // pred_check
        %p637 = pneg %p636
      $region58: #{tpu_custom_call.1} parent=51 // pred_check_branch
        %639 = sbr.rel (%p637) target = $region60
      $region59: #{tpu_custom_call.1} parent=51 // pred_region
        %v640 = vld [vmem:[%s544] sm:$0xff]
        %v641 = vld [vmem:[%s544 + $0x8] sm:$0xff]
        %v642 = vld [vmem:[%s544 + $0x10] sm:$0xff]
        %v643 = vld [vmem:[%s544 + $0x18] sm:$0xff]
        %v644 = vld [vmem:[%s544 + $0x20] sm:$0xff]
        %v645 = vld [vmem:[%s544 + $0x28] sm:$0xff]
        %v646 = vld [vmem:[%s544 + $0x30] sm:$0xff]
        %v647 = vld [vmem:[%s544 + $0x38] sm:$0xff]
        %v648 = vld [vmem:[%s544 + $0x40] sm:$0xff]
        %v649 = vld [vmem:[%s544 + $0x48] sm:$0xff]
        %v650 = vld [vmem:[%s544 + $0x50] sm:$0xff]
        %v651 = vld [vmem:[%s544 + $0x58] sm:$0xff]
        %v652 = vld [vmem:[%s544 + $0x60] sm:$0xff]
        %v653 = vld [vmem:[%s544 + $0x68] sm:$0xff]
        %v654 = vld [vmem:[%s544 + $0x70] sm:$0xff]
        %v655 = vld [vmem:[%s544 + $0x78] sm:$0xff]
        %v656 = vld [vmem:[%s570] sm:$0xff]
        %v657 = vld [vmem:[%s570 + $0x8] sm:$0xff]
        %v658 = vld [vmem:[%s570 + $0x10] sm:$0xff]
        %v659 = vld [vmem:[%s570 + $0x18] sm:$0xff]
        %v660 = vld [vmem:[%s570 + $0x20] sm:$0xff]
        %v661 = vld [vmem:[%s570 + $0x28] sm:$0xff]
        %v662 = vld [vmem:[%s570 + $0x30] sm:$0xff]
        %v663 = vld [vmem:[%s570 + $0x38] sm:$0xff]
        %v664 = vld [vmem:[%s570 + $0x40] sm:$0xff]
        %v665 = vld [vmem:[%s570 + $0x48] sm:$0xff]
        %v666 = vld [vmem:[%s570 + $0x50] sm:$0xff]
        %v667 = vld [vmem:[%s570 + $0x58] sm:$0xff]
        %v668 = vld [vmem:[%s570 + $0x60] sm:$0xff]
        %v669 = vld [vmem:[%s570 + $0x68] sm:$0xff]
        %v670 = vld [vmem:[%s570 + $0x70] sm:$0xff]
        %v671 = vld [vmem:[%s570 + $0x78] sm:$0xff]
        %v672 = vld [vmem:[%s594] sm:$0x1]
        %674 = vset.pattern.permute.xlu0 0
        %675 = vperm.xlu0 %674, %v656
        %v676 = vpop.permute.xlu0 %675
        %679 = vset.pattern.permute.xlu0 0
        %680 = vperm.xlu0 %679, %v657
        %v681 = vpop.permute.xlu0 %680
        %684 = vset.pattern.permute.xlu0 0
        %685 = vperm.xlu0 %684, %v658
        %v686 = vpop.permute.xlu0 %685
        %689 = vset.pattern.permute.xlu0 0
        %690 = vperm.xlu0 %689, %v659
        %v691 = vpop.permute.xlu0 %690
        %694 = vset.pattern.permute.xlu0 0
        %695 = vperm.xlu0 %694, %v660
        %v696 = vpop.permute.xlu0 %695
        %699 = vset.pattern.permute.xlu0 0
        %700 = vperm.xlu0 %699, %v661
        %v701 = vpop.permute.xlu0 %700
        %704 = vset.pattern.permute.xlu0 0
        %705 = vperm.xlu0 %704, %v662
        %v706 = vpop.permute.xlu0 %705
        %709 = vset.pattern.permute.xlu0 0
        %710 = vperm.xlu0 %709, %v663
        %v711 = vpop.permute.xlu0 %710
        %714 = vset.pattern.permute.xlu0 0
        %715 = vperm.xlu0 %714, %v664
        %v716 = vpop.permute.xlu0 %715
        %719 = vset.pattern.permute.xlu0 0
        %720 = vperm.xlu0 %719, %v665
        %v721 = vpop.permute.xlu0 %720
        %724 = vset.pattern.permute.xlu0 0
        %725 = vperm.xlu0 %724, %v666
        %v726 = vpop.permute.xlu0 %725
        %729 = vset.pattern.permute.xlu0 0
        %730 = vperm.xlu0 %729, %v667
        %v731 = vpop.permute.xlu0 %730
        %734 = vset.pattern.permute.xlu0 0
        %735 = vperm.xlu0 %734, %v668
        %v736 = vpop.permute.xlu0 %735
        %739 = vset.pattern.permute.xlu0 0
        %740 = vperm.xlu0 %739, %v669
        %v741 = vpop.permute.xlu0 %740
        %744 = vset.pattern.permute.xlu0 0
        %745 = vperm.xlu0 %744, %v670
        %v746 = vpop.permute.xlu0 %745
        %749 = vset.pattern.permute.xlu0 0
        %750 = vperm.xlu0 %749, %v671
        %v751 = vpop.permute.xlu0 %750
        %v753 = vmul.f32 %v676, %v640
        %v754 = vmul.f32 %v681, %v641
        %v755 = vmul.f32 %v686, %v642
        %v756 = vmul.f32 %v691, %v643
        %v757 = vmul.f32 %v696, %v644
        %v758 = vmul.f32 %v701, %v645
        %v759 = vmul.f32 %v706, %v646
        %v760 = vmul.f32 %v711, %v647
        %v761 = vmul.f32 %v716, %v648
        %v762 = vmul.f32 %v721, %v649
        %v763 = vmul.f32 %v726, %v650
        %v764 = vmul.f32 %v731, %v651
        %v765 = vmul.f32 %v736, %v652
        %v766 = vmul.f32 %v741, %v653
        %v767 = vmul.f32 %v746, %v654
        %v768 = vmul.f32 %v751, %v655
        %769 = vset.pattern.permute.xlu0 1
        %770 = vperm.xlu0 %769, %v656
        %v771 = vpop.permute.xlu0 %770
        %773 = vset.pattern.permute.xlu0 1
        %774 = vperm.xlu0 %773, %v657
        %v775 = vpop.permute.xlu0 %774
        %777 = vset.pattern.permute.xlu0 1
        %778 = vperm.xlu0 %777, %v658
        %v779 = vpop.permute.xlu0 %778
        %781 = vset.pattern.permute.xlu0 1
        %782 = vperm.xlu0 %781, %v659
        %v783 = vpop.permute.xlu0 %782
        %785 = vset.pattern.permute.xlu0 1
        %786 = vperm.xlu0 %785, %v660
        %v787 = vpop.permute.xlu0 %786
        %789 = vset.pattern.permute.xlu0 1
        %790 = vperm.xlu0 %789, %v661
        %v791 = vpop.permute.xlu0 %790
        %793 = vset.pattern.permute.xlu0 1
        %794 = vperm.xlu0 %793, %v662
        %v795 = vpop.permute.xlu0 %794
        %797 = vset.pattern.permute.xlu0 1
        %798 = vperm.xlu0 %797, %v663
        %v799 = vpop.permute.xlu0 %798
        %801 = vset.pattern.permute.xlu0 1
        %802 = vperm.xlu0 %801, %v664
        %v803 = vpop.permute.xlu0 %802
        %805 = vset.pattern.permute.xlu0 1
        %806 = vperm.xlu0 %805, %v665
        %v807 = vpop.permute.xlu0 %806
        %809 = vset.pattern.permute.xlu0 1
        %810 = vperm.xlu0 %809, %v666
        %v811 = vpop.permute.xlu0 %810
        %813 = vset.pattern.permute.xlu0 1
        %814 = vperm.xlu0 %813, %v667
        %v815 = vpop.permute.xlu0 %814
        %817 = vset.pattern.permute.xlu0 1
        %818 = vperm.xlu0 %817, %v668
        %v819 = vpop.permute.xlu0 %818
        %821 = vset.pattern.permute.xlu0 1
        %822 = vperm.xlu0 %821, %v669
        %v823 = vpop.permute.xlu0 %822
        %825 = vset.pattern.permute.xlu0 1
        %826 = vperm.xlu0 %825, %v670
        %v827 = vpop.permute.xlu0 %826
        %829 = vset.pattern.permute.xlu0 1
        %830 = vperm.xlu0 %829, %v671
        %v831 = vpop.permute.xlu0 %830
        %v833 = vmul.f32 %v771, %v640
        %v834 = vmul.f32 %v775, %v641
        %v835 = vmul.f32 %v779, %v642
        %v836 = vmul.f32 %v783, %v643
        %v837 = vmul.f32 %v787, %v644
        %v838 = vmul.f32 %v791, %v645
        %v839 = vmul.f32 %v795, %v646
        %v840 = vmul.f32 %v799, %v647
        %v841 = vmul.f32 %v803, %v648
        %v842 = vmul.f32 %v807, %v649
        %v843 = vmul.f32 %v811, %v650
        %v844 = vmul.f32 %v815, %v651
        %v845 = vmul.f32 %v819, %v652
        %v846 = vmul.f32 %v823, %v653
        %v847 = vmul.f32 %v827, %v654
        %v848 = vmul.f32 %v831, %v655
        %849 = vset.pattern.permute.xlu0 2
        %850 = vperm.xlu0 %849, %v656
        %v851 = vpop.permute.xlu0 %850
        %853 = vset.pattern.permute.xlu0 2
        %854 = vperm.xlu0 %853, %v657
        %v855 = vpop.permute.xlu0 %854
        %857 = vset.pattern.permute.xlu0 2
        %858 = vperm.xlu0 %857, %v658
        %v859 = vpop.permute.xlu0 %858
        %861 = vset.pattern.permute.xlu0 2
        %862 = vperm.xlu0 %861, %v659
        %v863 = vpop.permute.xlu0 %862
        %865 = vset.pattern.permute.xlu0 2
        %866 = vperm.xlu0 %865, %v660
        %v867 = vpop.permute.xlu0 %866
        %869 = vset.pattern.permute.xlu0 2
        %870 = vperm.xlu0 %869, %v661
        %v871 = vpop.permute.xlu0 %870
        %873 = vset.pattern.permute.xlu0 2
        %874 = vperm.xlu0 %873, %v662
        %v875 = vpop.permute.xlu0 %874
        %877 = vset.pattern.permute.xlu0 2
        %878 = vperm.xlu0 %877, %v663
        %v879 = vpop.permute.xlu0 %878
        %881 = vset.pattern.permute.xlu0 2
        %882 = vperm.xlu0 %881, %v664
        %v883 = vpop.permute.xlu0 %882
        %885 = vset.pattern.permute.xlu0 2
        %886 = vperm.xlu0 %885, %v665
        %v887 = vpop.permute.xlu0 %886
        %889 = vset.pattern.permute.xlu0 2
        %890 = vperm.xlu0 %889, %v666
        %v891 = vpop.permute.xlu0 %890
        %893 = vset.pattern.permute.xlu0 2
        %894 = vperm.xlu0 %893, %v667
        %v895 = vpop.permute.xlu0 %894
        %897 = vset.pattern.permute.xlu0 2
        %898 = vperm.xlu0 %897, %v668
        %v899 = vpop.permute.xlu0 %898
        %901 = vset.pattern.permute.xlu0 2
        %902 = vperm.xlu0 %901, %v669
        %v903 = vpop.permute.xlu0 %902
        %905 = vset.pattern.permute.xlu0 2
        %906 = vperm.xlu0 %905, %v670
        %v907 = vpop.permute.xlu0 %906
        %909 = vset.pattern.permute.xlu0 2
        %910 = vperm.xlu0 %909, %v671
        %v911 = vpop.permute.xlu0 %910
        %v913 = vmul.f32 %v851, %v640
        %v914 = vmul.f32 %v855, %v641
        %v915 = vmul.f32 %v859, %v642
        %v916 = vmul.f32 %v863, %v643
        %v917 = vmul.f32 %v867, %v644
        %v918 = vmul.f32 %v871, %v645
        %v919 = vmul.f32 %v875, %v646
        %v920 = vmul.f32 %v879, %v647
        %v921 = vmul.f32 %v883, %v648
        %v922 = vmul.f32 %v887, %v649
        %v923 = vmul.f32 %v891, %v650
        %v924 = vmul.f32 %v895, %v651
        %v925 = vmul.f32 %v899, %v652
        %v926 = vmul.f32 %v903, %v653
        %v927 = vmul.f32 %v907, %v654
        %v928 = vmul.f32 %v911, %v655
        %945 = vrot.lane.b32.xlu0 %v833, 8
        %v946 = vpop.permute.xlu0 %945
        %947 = vrot.lane.b32.xlu0 %v834, 8
        %v948 = vpop.permute.xlu0 %947
        %949 = vrot.lane.b32.xlu0 %v835, 8
        %v950 = vpop.permute.xlu0 %949
        %951 = vrot.lane.b32.xlu0 %v836, 8
        %v952 = vpop.permute.xlu0 %951
        %953 = vrot.lane.b32.xlu0 %v837, 8
        %v954 = vpop.permute.xlu0 %953
        %955 = vrot.lane.b32.xlu0 %v838, 8
        %v956 = vpop.permute.xlu0 %955
        %957 = vrot.lane.b32.xlu0 %v839, 8
        %v958 = vpop.permute.xlu0 %957
        %959 = vrot.lane.b32.xlu0 %v840, 8
        %v960 = vpop.permute.xlu0 %959
        %961 = vrot.lane.b32.xlu0 %v841, 8
        %v962 = vpop.permute.xlu0 %961
        %963 = vrot.lane.b32.xlu0 %v842, 8
        %v964 = vpop.permute.xlu0 %963
        %965 = vrot.lane.b32.xlu0 %v843, 8
        %v966 = vpop.permute.xlu0 %965
        %967 = vrot.lane.b32.xlu0 %v844, 8
        %v968 = vpop.permute.xlu0 %967
        %969 = vrot.lane.b32.xlu0 %v845, 8
        %v970 = vpop.permute.xlu0 %969
        %971 = vrot.lane.b32.xlu0 %v846, 8
        %v972 = vpop.permute.xlu0 %971
        %973 = vrot.lane.b32.xlu0 %v847, 8
        %v974 = vpop.permute.xlu0 %973
        %975 = vrot.lane.b32.xlu0 %v848, 8
        %v976 = vpop.permute.xlu0 %975
        %1009 = vrot.lane.b32.xlu0 %v913, 16
        %v1010 = vpop.permute.xlu0 %1009
        %1011 = vrot.lane.b32.xlu0 %v914, 16
        %v1012 = vpop.permute.xlu0 %1011
        %1013 = vrot.lane.b32.xlu0 %v915, 16
        %v1014 = vpop.permute.xlu0 %1013
        %1015 = vrot.lane.b32.xlu0 %v916, 16
        %v1016 = vpop.permute.xlu0 %1015
        %1017 = vrot.lane.b32.xlu0 %v917, 16
        %v1018 = vpop.permute.xlu0 %1017
        %1019 = vrot.lane.b32.xlu0 %v918, 16
        %v1020 = vpop.permute.xlu0 %1019
        %1021 = vrot.lane.b32.xlu0 %v919, 16
        %v1022 = vpop.permute.xlu0 %1021
        %1023 = vrot.lane.b32.xlu0 %v920, 16
        %v1024 = vpop.permute.xlu0 %1023
        %1025 = vrot.lane.b32.xlu0 %v921, 16
        %v1026 = vpop.permute.xlu0 %1025
        %1027 = vrot.lane.b32.xlu0 %v922, 16
        %v1028 = vpop.permute.xlu0 %1027
        %1029 = vrot.lane.b32.xlu0 %v923, 16
        %v1030 = vpop.permute.xlu0 %1029
        %1031 = vrot.lane.b32.xlu0 %v924, 16
        %v1032 = vpop.permute.xlu0 %1031
        %1033 = vrot.lane.b32.xlu0 %v925, 16
        %v1034 = vpop.permute.xlu0 %1033
        %1035 = vrot.lane.b32.xlu0 %v926, 16
        %v1036 = vpop.permute.xlu0 %1035
        %1037 = vrot.lane.b32.xlu0 %v927, 16
        %v1038 = vpop.permute.xlu0 %1037
        %1039 = vrot.lane.b32.xlu0 %v928, 16
        %v1040 = vpop.permute.xlu0 %1039
        %vm1057 = vcmask 64512
        %v1058 = vsel %vm1057, %v753, %v946
        %v1059 = vsel %vm1057, %v754, %v948
        %v1060 = vsel %vm1057, %v755, %v950
        %v1061 = vsel %vm1057, %v756, %v952
        %v1062 = vsel %vm1057, %v757, %v954
        %v1063 = vsel %vm1057, %v758, %v956
        %v1064 = vsel %vm1057, %v759, %v958
        %v1065 = vsel %vm1057, %v760, %v960
        %v1066 = vsel %vm1057, %v761, %v962
        %v1067 = vsel %vm1057, %v762, %v964
        %v1068 = vsel %vm1057, %v763, %v966
        %v1069 = vsel %vm1057, %v764, %v968
        %v1070 = vsel %vm1057, %v765, %v970
        %v1071 = vsel %vm1057, %v766, %v972
        %v1072 = vsel %vm1057, %v767, %v974
        %v1073 = vsel %vm1057, %v768, %v976
        %vm1074 = vcmask 130048
        %v1075 = vsel %vm1074, %v1058, %v1010
        %v1076 = vsel %vm1074, %v1059, %v1012
        %v1077 = vsel %vm1074, %v1060, %v1014
        %v1078 = vsel %vm1074, %v1061, %v1016
        %v1079 = vsel %vm1074, %v1062, %v1018
        %v1080 = vsel %vm1074, %v1063, %v1020
        %v1081 = vsel %vm1074, %v1064, %v1022
        %v1082 = vsel %vm1074, %v1065, %v1024
        %v1083 = vsel %vm1074, %v1066, %v1026
        %v1084 = vsel %vm1074, %v1067, %v1028
        %v1085 = vsel %vm1074, %v1068, %v1030
        %v1086 = vsel %vm1074, %v1069, %v1032
        %v1087 = vsel %vm1074, %v1070, %v1034
        %v1088 = vsel %vm1074, %v1071, %v1036
        %v1089 = vsel %vm1074, %v1072, %v1038
        %v1090 = vsel %vm1074, %v1073, %v1040
        %v1091 = vld [vmem:[%s7] sm:$0xff]
        %v1092 = vld [vmem:[%s7 + $0x8] sm:$0xff]
        %v1093 = vld [vmem:[%s7 + $0x10] sm:$0xff]
        %vm1094 = vcmask 195584
        %v1096 = vsel %vm1094, %v1075, 0
        %v1099 = vsel %vm1094, %v1076, 0
        %v1102 = vsel %vm1094, %v1077, 0
        %v1105 = vsel %vm1094, %v1078, 0
        %v1108 = vsel %vm1094, %v1079, 0
        %v1111 = vsel %vm1094, %v1080, 0
        %v1114 = vsel %vm1094, %v1081, 0
        %v1117 = vsel %vm1094, %v1082, 0
        %v1120 = vsel %vm1094, %v1083, 0
        %v1123 = vsel %vm1094, %v1084, 0
        %v1126 = vsel %vm1094, %v1085, 0
        %v1129 = vsel %vm1094, %v1086, 0
        %v1132 = vsel %vm1094, %v1087, 0
        %v1135 = vsel %vm1094, %v1088, 0
        %v1138 = vsel %vm1094, %v1089, 0
        %v1141 = vsel %vm1094, %v1090, 0
        %1143 = vmatprep.subr.mxu0 0.0
        %1144 = vmatpush1.msra.mxu0 %v1091
        %1145 = vmatprep.subr.mxu0 0.0
        %1146 = vmatpush1.msra.mxu0 %v1092
        %1147 = vmatprep.subr.mxu0 0.0
        %1148 = vmatpush1.msra.mxu0 %v1093
        %1149 = vmatprep.subr.mxu0 0.0
        %1150 = vmatpush1.msra.mxu0 0.0
        %1151 = vmatprep.subr.mxu0 0.0
        %1152 = vmatpush1.msra.mxu0 0.0
        %1153 = vmatprep.subr.mxu0 0.0
        %1154 = vmatpush1.msra.mxu0 0.0
        %1155 = vmatprep.subr.mxu0 0.0
        %1156 = vmatpush1.msra.mxu0 0.0
        %1157 = vmatprep.subr.mxu0 0.0
        %1158 = vmatpush1.msra.mxu0 0.0
        %1159 = vmatprep.subr.mxu0 0.0
        %1160 = vmatpush1.msra.mxu0 0.0
        %1161 = vmatprep.subr.mxu0 0.0
        %1162 = vmatpush1.msra.mxu0 0.0
        %1163 = vmatprep.subr.mxu0 0.0
        %1164 = vmatpush1.msra.mxu0 0.0
        %1165 = vmatprep.subr.mxu0 0.0
        %1166 = vmatpush1.msra.mxu0 0.0
        %1167 = vmatprep.subr.mxu0 0.0
        %1168 = vmatpush1.msra.mxu0 0.0
        %1169 = vmatprep.subr.mxu0 0.0
        %1170 = vmatpush1.msra.mxu0 0.0
        %1171 = vmatprep.subr.mxu0 0.0
        %1172 = vmatpush1.msra.mxu0 0.0
        %1173 = vmatprep.subr.mxu0 0.0
        %1174 = vmatpush1.msra.mxu0 0.0
        %1175 = vmatprep.subr.mxu0 0.0
        %1176 = vmatpush1.msra.mxu0 0.0
        %1177 = vmatprep.subr.mxu0 0.0
        %1178 = vmatpush1.msra.mxu0 0.0
        %1179 = vmatprep.subr.mxu0 0.0
        %1180 = vmatpush1.msra.mxu0 0.0
        %1181 = vmatprep.subr.mxu0 0.0
        %1182 = vmatpush1.msra.mxu0 0.0
        %1183 = vmatprep.subr.mxu0 0.0
        %1184 = vmatpush1.msra.mxu0 0.0
        %1185 = vmatprep.subr.mxu0 0.0
        %1186 = vmatpush1.msra.mxu0 0.0
        %1187 = vmatprep.subr.mxu0 0.0
        %1188 = vmatpush1.msra.mxu0 0.0
        %1189 = vmatprep.subr.mxu0 0.0
        %1190 = vmatpush1.msra.mxu0 0.0
        %1191 = vmatprep.subr.mxu0 0.0
        %1192 = vmatpush1.msra.mxu0 0.0
        %1193 = vmatprep.subr.mxu0 0.0
        %1194 = vmatpush1.msra.mxu0 0.0
        %1195 = vmatprep.subr.mxu0 0.0
        %1196 = vmatpush1.msra.mxu0 0.0
        %1197 = vmatprep.subr.mxu0 0.0
        %1198 = vmatpush1.msra.mxu0 0.0
        %1199 = vmatprep.subr.mxu0 0.0
        %1200 = vmatpush1.msra.mxu0 0.0
        %1201 = vmatprep.subr.mxu0 0.0
        %1202 = vmatpush1.msra.mxu0 0.0
        %1203 = vmatprep.subr.mxu0 0.0
        %1204 = vmatpush1.msra.mxu0 0.0
        %1205 = vmatprep.subr.mxu0 0.0
        %1206 = vmatpush1.msra.mxu0 0.0
        %1207 = vmatprep.mubr.f32.mxu0 0.0
        %1208 = vmatmul.mubr.f32.gmra.mrb[0].mxu0 %v1096
        %v1209 = vpop.f32.mrb[0].mxu0
        %v1210 = vadd.f32 0.0, %v1209
        %v1211 = vpop.f32.mrb[0].mxu0
        %1212 = vmatprep.mubr.f32.mxu0 0.0
        %1213 = vmatmul.mubr.f32.gmra.mrb[0].mxu0 %v1099
        %v1214 = vpop.f32.mrb[0].mxu0
        %v1215 = vadd.f32 0.0, %v1214
        %v1216 = vpop.f32.mrb[0].mxu0
        %1217 = vmatprep.mubr.f32.mxu0 0.0
        %1218 = vmatmul.mubr.f32.gmra.mrb[0].mxu0 %v1102
        %v1219 = vpop.f32.mrb[0].mxu0
        %v1220 = vadd.f32 0.0, %v1219
        %v1221 = vpop.f32.mrb[0].mxu0
        %1222 = vmatprep.mubr.f32.mxu0 0.0
        %1223 = vmatmul.mubr.f32.gmra.mrb[0].mxu0 %v1105
        %v1224 = vpop.f32.mrb[0].mxu0
        %v1225 = vadd.f32 0.0, %v1224
        %v1226 = vpop.f32.mrb[0].mxu0
        %1227 = vmatprep.mubr.f32.mxu0 0.0
        %1228 = vmatmul.mubr.f32.gmra.mrb[0].mxu0 %v1108
        %v1229 = vpop.f32.mrb[0].mxu0
        %v1230 = vadd.f32 0.0, %v1229
        %v1231 = vpop.f32.mrb[0].mxu0
        %1232 = vmatprep.mubr.f32.mxu0 0.0
        %1233 = vmatmul.mubr.f32.gmra.mrb[0].mxu0 %v1111
        %v1234 = vpop.f32.mrb[0].mxu0
        %v1235 = vadd.f32 0.0, %v1234
        %v1236 = vpop.f32.mrb[0].mxu0
        %1237 = vmatprep.mubr.f32.mxu0 0.0
        %1238 = vmatmul.mubr.f32.gmra.mrb[0].mxu0 %v1114
        %v1239 = vpop.f32.mrb[0].mxu0
        %v1240 = vadd.f32 0.0, %v1239
        %v1241 = vpop.f32.mrb[0].mxu0
        %1242 = vmatprep.mubr.f32.mxu0 0.0
        %1243 = vmatmul.mubr.f32.gmra.mrb[0].mxu0 %v1117
        %v1244 = vpop.f32.mrb[0].mxu0
        %v1245 = vadd.f32 0.0, %v1244
        %v1246 = vpop.f32.mrb[0].mxu0
        %1247 = vmatprep.mubr.f32.mxu0 0.0
        %1248 = vmatmul.mubr.f32.gmra.mrb[0].mxu0 %v1120
        %v1249 = vpop.f32.mrb[0].mxu0
        %v1250 = vadd.f32 0.0, %v1249
        %v1251 = vpop.f32.mrb[0].mxu0
        %1252 = vmatprep.mubr.f32.mxu0 0.0
        %1253 = vmatmul.mubr.f32.gmra.mrb[0].mxu0 %v1123
        %v1254 = vpop.f32.mrb[0].mxu0
        %v1255 = vadd.f32 0.0, %v1254
        %v1256 = vpop.f32.mrb[0].mxu0
        %1257 = vmatprep.mubr.f32.mxu0 0.0
        %1258 = vmatmul.mubr.f32.gmra.mrb[0].mxu0 %v1126
        %v1259 = vpop.f32.mrb[0].mxu0
        %v1260 = vadd.f32 0.0, %v1259
        %v1261 = vpop.f32.mrb[0].mxu0
        %1262 = vmatprep.mubr.f32.mxu0 0.0
        %1263 = vmatmul.mubr.f32.gmra.mrb[0].mxu0 %v1129
        %v1264 = vpop.f32.mrb[0].mxu0
        %v1265 = vadd.f32 0.0, %v1264
        %v1266 = vpop.f32.mrb[0].mxu0
        %1267 = vmatprep.mubr.f32.mxu0 0.0
        %1268 = vmatmul.mubr.f32.gmra.mrb[0].mxu0 %v1132
        %v1269 = vpop.f32.mrb[0].mxu0
        %v1270 = vadd.f32 0.0, %v1269
        %v1271 = vpop.f32.mrb[0].mxu0
        %1272 = vmatprep.mubr.f32.mxu0 0.0
        %1273 = vmatmul.mubr.f32.gmra.mrb[0].mxu0 %v1135
        %v1274 = vpop.f32.mrb[0].mxu0
        %v1275 = vadd.f32 0.0, %v1274
        %v1276 = vpop.f32.mrb[0].mxu0
        %1277 = vmatprep.mubr.f32.mxu0 0.0
        %1278 = vmatmul.mubr.f32.gmra.mrb[0].mxu0 %v1138
        %v1279 = vpop.f32.mrb[0].mxu0
        %v1280 = vadd.f32 0.0, %v1279
        %v1281 = vpop.f32.mrb[0].mxu0
        %1282 = vmatprep.mubr.f32.mxu0 0.0
        %1283 = vmatmul.mubr.f32.gmra.mrb[0].mxu0 %v1141
        %v1284 = vpop.f32.mrb[0].mxu0
        %v1285 = vadd.f32 0.0, %v1284
        %v1286 = vpop.f32.mrb[0].mxu0
        %1287 = vdwg.mxu0
        %s1288 = smul.u32 %s35, 64
        %v1289 = vstv %s1288
        %v1290 = vsub.s32 %v672, %v1289
        %v1291 = vlaneseq
        %v1292 = vshrl.u32 %v1291, 7
        %v1293 = vadd.s32 %v1292, 8
        %v1294 = vadd.s32 %v1292, 16
        %v1295 = vadd.s32 %v1292, 24
        %v1296 = vadd.s32 %v1292, 32
        %v1297 = vadd.s32 %v1292, 40
        %v1298 = vadd.s32 %v1292, 48
        %v1299 = vadd.s32 %v1292, 56
        %v1300 = vlaneseq
        %v1301 = vshrl.u32 %v1300, 7
        %v1302 = vsub.s32 0, %v1301
        %v1303 = vrot.slane %v1290, %v1302
        %vm1304 = vcmp.eq.s32.totalorder %v1292, %v1303
        %vm1305 = vcmp.eq.s32.totalorder %v1293, %v1303
        %vm1306 = vcmp.eq.s32.totalorder %v1294, %v1303
        %vm1307 = vcmp.eq.s32.totalorder %v1295, %v1303
        %vm1308 = vcmp.eq.s32.totalorder %v1296, %v1303
        %vm1309 = vcmp.eq.s32.totalorder %v1297, %v1303
        %vm1310 = vcmp.eq.s32.totalorder %v1298, %v1303
        %vm1311 = vcmp.eq.s32.totalorder %v1299, %v1303
        %v1312 = vsel %vm1304, 1, 0
        %v1313 = vsel %vm1305, 1, 0
        %v1314 = vsel %vm1306, 1, 0
        %v1315 = vsel %vm1307, 1, 0
        %v1316 = vsel %vm1308, 1, 0
        %v1317 = vsel %vm1309, 1, 0
        %v1318 = vsel %vm1310, 1, 0
        %v1319 = vsel %vm1311, 1, 0
        %v1320 = vcvt.s32.f32 %v1312
        %v1321 = vcvt.s32.f32 %v1313
        %v1322 = vcvt.s32.f32 %v1314
        %v1323 = vcvt.s32.f32 %v1315
        %v1324 = vcvt.s32.f32 %v1316
        %v1325 = vcvt.s32.f32 %v1317
        %v1326 = vcvt.s32.f32 %v1318
        %v1327 = vcvt.s32.f32 %v1319
        %v1328 = vld [vmem:[#allocation2] sm:$0xff]
        %v1329 = vld [vmem:[#allocation2 + $0x8] sm:$0xff]
        %v1330 = vld [vmem:[#allocation2 + $0x10] sm:$0xff]
        %v1331 = vld [vmem:[#allocation2 + $0x18] sm:$0xff]
        %v1332 = vld [vmem:[#allocation2 + $0x20] sm:$0xff]
        %v1333 = vld [vmem:[#allocation2 + $0x28] sm:$0xff]
        %v1334 = vld [vmem:[#allocation2 + $0x30] sm:$0xff]
        %v1335 = vld [vmem:[#allocation2 + $0x38] sm:$0xff]
        %1336 = vmatprep.subr.mxu0 0.0
        %1337 = vmatpush1.msra.mxu0 %v1210
        %1338 = vmatprep.subr.mxu0 0.0
        %1339 = vmatpush1.msra.mxu0 %v1215
        %1340 = vmatprep.subr.mxu0 0.0
        %1341 = vmatpush1.msra.mxu0 %v1220
        %1342 = vmatprep.subr.mxu0 0.0
        %1343 = vmatpush1.msra.mxu0 %v1225
        %1344 = vmatprep.subr.mxu0 0.0
        %1345 = vmatpush1.msra.mxu0 %v1230
        %1346 = vmatprep.subr.mxu0 0.0
        %1347 = vmatpush1.msra.mxu0 %v1235
        %1348 = vmatprep.subr.mxu0 0.0
        %1349 = vmatpush1.msra.mxu0 %v1240
        %1350 = vmatprep.subr.mxu0 0.0
        %1351 = vmatpush1.msra.mxu0 %v1245
        %1352 = vmatprep.subr.mxu0 0.0
        %1353 = vmatpush1.msra.mxu0 %v1250
        %1354 = vmatprep.subr.mxu0 0.0
        %1355 = vmatpush1.msra.mxu0 %v1255
        %1356 = vmatprep.subr.mxu0 0.0
        %1357 = vmatpush1.msra.mxu0 %v1260
        %1358 = vmatprep.subr.mxu0 0.0
        %1359 = vmatpush1.msra.mxu0 %v1265
        %1360 = vmatprep.subr.mxu0 0.0
        %1361 = vmatpush1.msra.mxu0 %v1270
        %1362 = vmatprep.subr.mxu0 0.0
        %1363 = vmatpush1.msra.mxu0 %v1275
        %1364 = vmatprep.subr.mxu0 0.0
        %1365 = vmatpush1.msra.mxu0 %v1280
        %1366 = vmatprep.subr.mxu0 0.0
        %1367 = vmatpush1.msra.mxu0 %v1285
        %1368 = vmatprep.subr.mxu0 0.0
        %1369 = vmatpush1.msra.mxu0 0.0
        %1370 = vmatprep.subr.mxu0 0.0
        %1371 = vmatpush1.msra.mxu0 0.0
        %1372 = vmatprep.subr.mxu0 0.0
        %1373 = vmatpush1.msra.mxu0 0.0
        %1374 = vmatprep.subr.mxu0 0.0
        %1375 = vmatpush1.msra.mxu0 0.0
        %1376 = vmatprep.subr.mxu0 0.0
        %1377 = vmatpush1.msra.mxu0 0.0
        %1378 = vmatprep.subr.mxu0 0.0
        %1379 = vmatpush1.msra.mxu0 0.0
        %1380 = vmatprep.subr.mxu0 0.0
        %1381 = vmatpush1.msra.mxu0 0.0
        %1382 = vmatprep.subr.mxu0 0.0
        %1383 = vmatpush1.msra.mxu0 0.0
        %1384 = vmatprep.subr.mxu0 0.0
        %1385 = vmatpush1.msra.mxu0 0.0
        %1386 = vmatprep.subr.mxu0 0.0
        %1387 = vmatpush1.msra.mxu0 0.0
        %1388 = vmatprep.subr.mxu0 0.0
        %1389 = vmatpush1.msra.mxu0 0.0
        %1390 = vmatprep.subr.mxu0 0.0
        %1391 = vmatpush1.msra.mxu0 0.0
        %1392 = vmatprep.subr.mxu0 0.0
        %1393 = vmatpush1.msra.mxu0 0.0
        %1394 = vmatprep.subr.mxu0 0.0
        %1395 = vmatpush1.msra.mxu0 0.0
        %1396 = vmatprep.subr.mxu0 0.0
        %1397 = vmatpush1.msra.mxu0 0.0
        %1398 = vmatprep.subr.mxu0 0.0
        %1399 = vmatpush1.msra.mxu0 0.0
        %1400 = vmatprep.mubr.f32.mxu0 0.0
        %1401 = vmatmul.mubr.f32.gmra.mrb[0].mxu0 %v1320
        %v1402 = vpop.f32.mrb[0].mxu0
        %v1403 = vadd.f32 0.0, %v1402
        %v1404 = vpop.f32.mrb[0].mxu0
        %1405 = vmatprep.mubr.f32.mxu0 0.0
        %1406 = vmatmul.mubr.f32.gmra.mrb[0].mxu0 %v1321
        %v1407 = vpop.f32.mrb[0].mxu0
        %v1408 = vadd.f32 0.0, %v1407
        %v1409 = vpop.f32.mrb[0].mxu0
        %1410 = vmatprep.mubr.f32.mxu0 0.0
        %1411 = vmatmul.mubr.f32.gmra.mrb[0].mxu0 %v1322
        %v1412 = vpop.f32.mrb[0].mxu0
        %v1413 = vadd.f32 0.0, %v1412
        %v1414 = vpop.f32.mrb[0].mxu0
        %1415 = vmatprep.mubr.f32.mxu0 0.0
        %1416 = vmatmul.mubr.f32.gmra.mrb[0].mxu0 %v1323
        %v1417 = vpop.f32.mrb[0].mxu0
        %v1418 = vadd.f32 0.0, %v1417
        %v1419 = vpop.f32.mrb[0].mxu0
        %1420 = vmatprep.mubr.f32.mxu0 0.0
        %1421 = vmatmul.mubr.f32.gmra.mrb[0].mxu0 %v1324
        %v1422 = vpop.f32.mrb[0].mxu0
        %v1423 = vadd.f32 0.0, %v1422
        %v1424 = vpop.f32.mrb[0].mxu0
        %1425 = vmatprep.mubr.f32.mxu0 0.0
        %1426 = vmatmul.mubr.f32.gmra.mrb[0].mxu0 %v1325
        %v1427 = vpop.f32.mrb[0].mxu0
        %v1428 = vadd.f32 0.0, %v1427
        %v1429 = vpop.f32.mrb[0].mxu0
        %1430 = vmatprep.mubr.f32.mxu0 0.0
        %1431 = vmatmul.mubr.f32.gmra.mrb[0].mxu0 %v1326
        %v1432 = vpop.f32.mrb[0].mxu0
        %v1433 = vadd.f32 0.0, %v1432
        %v1434 = vpop.f32.mrb[0].mxu0
        %1435 = vmatprep.mubr.f32.mxu0 0.0
        %1436 = vmatmul.mubr.f32.gmra.mrb[0].mxu0 %v1327
        %v1437 = vpop.f32.mrb[0].mxu0
        %v1438 = vadd.f32 0.0, %v1437
        %v1439 = vpop.f32.mrb[0].mxu0
        %1440 = vdwg.mxu0
        %v1441 = vadd.f32 %v1328, %v1403
        %v1442 = vadd.f32 %v1329, %v1408
        %v1443 = vadd.f32 %v1330, %v1413
        %v1444 = vadd.f32 %v1331, %v1418
        %v1445 = vadd.f32 %v1332, %v1423
        %v1446 = vadd.f32 %v1333, %v1428
        %v1447 = vadd.f32 %v1334, %v1433
        %v1448 = vadd.f32 %v1335, %v1438
        %1449 = vst [vmem:[#allocation2] sm:$0xff] %v1441
        %1450 = vst [vmem:[#allocation2 + $0x8] sm:$0xff] %v1442
        %1451 = vst [vmem:[#allocation2 + $0x10] sm:$0xff] %v1443
        %1452 = vst [vmem:[#allocation2 + $0x18] sm:$0xff] %v1444
        %1453 = vst [vmem:[#allocation2 + $0x20] sm:$0xff] %v1445
        %1454 = vst [vmem:[#allocation2 + $0x28] sm:$0xff] %v1446
        %1455 = vst [vmem:[#allocation2 + $0x30] sm:$0xff] %v1447
        %1456 = vst [vmem:[#allocation2 + $0x38] sm:$0xff] %v1448
      $region60: #{tpu_custom_call.1} parent=51 // pred_fallthru
        _
      %p1457 = scmp.eq.s32.totalorder %s36, 2
      // Predicated region
      $region61: #{tpu_custom_call.1} parent=51 // pred_check
        %p1458 = pneg %p1457
      $region62: #{tpu_custom_call.1} parent=51 // pred_check_branch
        %1460 = sbr.rel (%p1458) target = $region64
      $region63: #{tpu_custom_call.1} parent=51 // pred_region
        %v1461 = vld [vmem:[%s609] sm:$0xff]
        %v1462 = vld [vmem:[%s609 + $0x8] sm:$0xff]
        %v1463 = vld [vmem:[%s609 + $0x10] sm:$0xff]
        %v1464 = vld [vmem:[%s609 + $0x18] sm:$0xff]
        %v1465 = vld [vmem:[%s609 + $0x20] sm:$0xff]
        %v1466 = vld [vmem:[%s609 + $0x28] sm:$0xff]
        %v1467 = vld [vmem:[%s609 + $0x30] sm:$0xff]
        %v1468 = vld [vmem:[%s609 + $0x38] sm:$0xff]
        %v1469 = vld [vmem:[#allocation2] sm:$0xff]
        %v1470 = vld [vmem:[#allocation2 + $0x8] sm:$0xff]
        %v1471 = vld [vmem:[#allocation2 + $0x10] sm:$0xff]
        %v1472 = vld [vmem:[#allocation2 + $0x18] sm:$0xff]
        %v1473 = vld [vmem:[#allocation2 + $0x20] sm:$0xff]
        %v1474 = vld [vmem:[#allocation2 + $0x28] sm:$0xff]
        %v1475 = vld [vmem:[#allocation2 + $0x30] sm:$0xff]
        %v1476 = vld [vmem:[#allocation2 + $0x38] sm:$0xff]
        %v1477 = vld [vmem:[%s615] sm:$0xff]
        %v1478 = vld [vmem:[%s615 + $0x8] sm:$0xff]
        %v1479 = vld [vmem:[%s615 + $0x10] sm:$0xff]
        %v1480 = vld [vmem:[%s615 + $0x18] sm:$0xff]
        %v1481 = vld [vmem:[%s615 + $0x20] sm:$0xff]
        %v1482 = vld [vmem:[%s615 + $0x28] sm:$0xff]
        %v1483 = vld [vmem:[%s615 + $0x30] sm:$0xff]
        %v1484 = vld [vmem:[%s615 + $0x38] sm:$0xff]
        %1486 = vset.pattern.permute.xlu0 0
        %1487 = vperm.xlu0 %1486, %v1477
        %v1488 = vpop.permute.xlu0 %1487
        %1491 = vset.pattern.permute.xlu0 0
        %1492 = vperm.xlu0 %1491, %v1478
        %v1493 = vpop.permute.xlu0 %1492
        %1496 = vset.pattern.permute.xlu0 0
        %1497 = vperm.xlu0 %1496, %v1479
        %v1498 = vpop.permute.xlu0 %1497
        %1501 = vset.pattern.permute.xlu0 0
        %1502 = vperm.xlu0 %1501, %v1480
        %v1503 = vpop.permute.xlu0 %1502
        %1506 = vset.pattern.permute.xlu0 0
        %1507 = vperm.xlu0 %1506, %v1481
        %v1508 = vpop.permute.xlu0 %1507
        %1511 = vset.pattern.permute.xlu0 0
        %1512 = vperm.xlu0 %1511, %v1482
        %v1513 = vpop.permute.xlu0 %1512
        %1516 = vset.pattern.permute.xlu0 0
        %1517 = vperm.xlu0 %1516, %v1483
        %v1518 = vpop.permute.xlu0 %1517
        %1521 = vset.pattern.permute.xlu0 0
        %1522 = vperm.xlu0 %1521, %v1484
        %v1523 = vpop.permute.xlu0 %1522
        %v1525 = vmul.f32 %v1469, %v1488
        %v1526 = vmul.f32 %v1470, %v1493
        %v1527 = vmul.f32 %v1471, %v1498
        %v1528 = vmul.f32 %v1472, %v1503
        %v1529 = vmul.f32 %v1473, %v1508
        %v1530 = vmul.f32 %v1474, %v1513
        %v1531 = vmul.f32 %v1475, %v1518
        %v1532 = vmul.f32 %v1476, %v1523
        %v1533 = vld [vmem:[%s8] sm:$0xff]
        %vm1534 = vcmask 64512
        %v1536 = vsel %vm1534, %v1461, 0
        %v1539 = vsel %vm1534, %v1462, 0
        %v1542 = vsel %vm1534, %v1463, 0
        %v1545 = vsel %vm1534, %v1464, 0
        %v1548 = vsel %vm1534, %v1465, 0
        %v1551 = vsel %vm1534, %v1466, 0
        %v1554 = vsel %vm1534, %v1467, 0
        %v1557 = vsel %vm1534, %v1468, 0
        %1559 = vmatprep.subr.mxu0 0.0
        %1560 = vmatpush1.msra.mxu0 %v1533
        %1561 = vmatprep.subr.mxu0 0.0
        %1562 = vmatpush1.msra.mxu0 0.0
        %1563 = vmatprep.subr.mxu0 0.0
        %1564 = vmatpush1.msra.mxu0 0.0
        %1565 = vmatprep.subr.mxu0 0.0
        %1566 = vmatpush1.msra.mxu0 0.0
        %1567 = vmatprep.subr.mxu0 0.0
        %1568 = vmatpush1.msra.mxu0 0.0
        %1569 = vmatprep.subr.mxu0 0.0
        %1570 = vmatpush1.msra.mxu0 0.0
        %1571 = vmatprep.subr.mxu0 0.0
        %1572 = vmatpush1.msra.mxu0 0.0
        %1573 = vmatprep.subr.mxu0 0.0
        %1574 = vmatpush1.msra.mxu0 0.0
        %1575 = vmatprep.subr.mxu0 0.0
        %1576 = vmatpush1.msra.mxu0 0.0
        %1577 = vmatprep.subr.mxu0 0.0
        %1578 = vmatpush1.msra.mxu0 0.0
        %1579 = vmatprep.subr.mxu0 0.0
        %1580 = vmatpush1.msra.mxu0 0.0
        %1581 = vmatprep.subr.mxu0 0.0
        %1582 = vmatpush1.msra.mxu0 0.0
        %1583 = vmatprep.subr.mxu0 0.0
        %1584 = vmatpush1.msra.mxu0 0.0
        %1585 = vmatprep.subr.mxu0 0.0
        %1586 = vmatpush1.msra.mxu0 0.0
        %1587 = vmatprep.subr.mxu0 0.0
        %1588 = vmatpush1.msra.mxu0 0.0
        %1589 = vmatprep.subr.mxu0 0.0
        %1590 = vmatpush1.msra.mxu0 0.0
        %1591 = vmatprep.subr.mxu0 0.0
        %1592 = vmatpush1.msra.mxu0 0.0
        %1593 = vmatprep.subr.mxu0 0.0
        %1594 = vmatpush1.msra.mxu0 0.0
        %1595 = vmatprep.subr.mxu0 0.0
        %1596 = vmatpush1.msra.mxu0 0.0
        %1597 = vmatprep.subr.mxu0 0.0
        %1598 = vmatpush1.msra.mxu0 0.0
        %1599 = vmatprep.subr.mxu0 0.0
        %1600 = vmatpush1.msra.mxu0 0.0
        %1601 = vmatprep.subr.mxu0 0.0
        %1602 = vmatpush1.msra.mxu0 0.0
        %1603 = vmatprep.subr.mxu0 0.0
        %1604 = vmatpush1.msra.mxu0 0.0
        %1605 = vmatprep.subr.mxu0 0.0
        %1606 = vmatpush1.msra.mxu0 0.0
        %1607 = vmatprep.subr.mxu0 0.0
        %1608 = vmatpush1.msra.mxu0 0.0
        %1609 = vmatprep.subr.mxu0 0.0
        %1610 = vmatpush1.msra.mxu0 0.0
        %1611 = vmatprep.subr.mxu0 0.0
        %1612 = vmatpush1.msra.mxu0 0.0
        %1613 = vmatprep.subr.mxu0 0.0
        %1614 = vmatpush1.msra.mxu0 0.0
        %1615 = vmatprep.subr.mxu0 0.0
        %1616 = vmatpush1.msra.mxu0 0.0
        %1617 = vmatprep.subr.mxu0 0.0
        %1618 = vmatpush1.msra.mxu0 0.0
        %1619 = vmatprep.subr.mxu0 0.0
        %1620 = vmatpush1.msra.mxu0 0.0
        %1621 = vmatprep.subr.mxu0 0.0
        %1622 = vmatpush1.msra.mxu0 0.0
        %1623 = vmatprep.mubr.f32.mxu0 0.0
        %1624 = vmatmul.mubr.f32.gmra.mrb[0].mxu0 %v1536
        %v1625 = vpop.f32.mrb[0].mxu0
        %v1626 = vadd.f32 0.0, %v1625
        %v1627 = vpop.f32.mrb[0].mxu0
        %1628 = vmatprep.mubr.f32.mxu0 0.0
        %1629 = vmatmul.mubr.f32.gmra.mrb[0].mxu0 %v1539
        %v1630 = vpop.f32.mrb[0].mxu0
        %v1631 = vadd.f32 0.0, %v1630
        %v1632 = vpop.f32.mrb[0].mxu0
        %1633 = vmatprep.mubr.f32.mxu0 0.0
        %1634 = vmatmul.mubr.f32.gmra.mrb[0].mxu0 %v1542
        %v1635 = vpop.f32.mrb[0].mxu0
        %v1636 = vadd.f32 0.0, %v1635
        %v1637 = vpop.f32.mrb[0].mxu0
        %1638 = vmatprep.mubr.f32.mxu0 0.0
        %1639 = vmatmul.mubr.f32.gmra.mrb[0].mxu0 %v1545
        %v1640 = vpop.f32.mrb[0].mxu0
        %v1641 = vadd.f32 0.0, %v1640
        %v1642 = vpop.f32.mrb[0].mxu0
        %1643 = vmatprep.mubr.f32.mxu0 0.0
        %1644 = vmatmul.mubr.f32.gmra.mrb[0].mxu0 %v1548
        %v1645 = vpop.f32.mrb[0].mxu0
        %v1646 = vadd.f32 0.0, %v1645
        %v1647 = vpop.f32.mrb[0].mxu0
        %1648 = vmatprep.mubr.f32.mxu0 0.0
        %1649 = vmatmul.mubr.f32.gmra.mrb[0].mxu0 %v1551
        %v1650 = vpop.f32.mrb[0].mxu0
        %v1651 = vadd.f32 0.0, %v1650
        %v1652 = vpop.f32.mrb[0].mxu0
        %1653 = vmatprep.mubr.f32.mxu0 0.0
        %1654 = vmatmul.mubr.f32.gmra.mrb[0].mxu0 %v1554
        %v1655 = vpop.f32.mrb[0].mxu0
        %v1656 = vadd.f32 0.0, %v1655
        %v1657 = vpop.f32.mrb[0].mxu0
        %1658 = vmatprep.mubr.f32.mxu0 0.0
        %1659 = vmatmul.mubr.f32.gmra.mrb[0].mxu0 %v1557
        %v1660 = vpop.f32.mrb[0].mxu0
        %v1661 = vadd.f32 0.0, %v1660
        %v1662 = vpop.f32.mrb[0].mxu0
        %1663 = vdwg.mxu0
        %v1664 = vadd.f32 %v1525, %v1626
        %v1665 = vadd.f32 %v1526, %v1631
        %v1666 = vadd.f32 %v1527, %v1636
        %v1667 = vadd.f32 %v1528, %v1641
        %v1668 = vadd.f32 %v1529, %v1646
        %v1669 = vadd.f32 %v1530, %v1651
        %v1670 = vadd.f32 %v1531, %v1656
        %v1671 = vadd.f32 %v1532, %v1661
        %v1672 = vld [vmem:[%s9] sm:$0x1]
        %v1674 = vlaneseq
        %v1675 = vshrl.u32 %v1674, 7
        %v1676 = vsub.s32 0, %v1675
        %v1677 = vrot.slane %v1672, %v1676
        %v1679 = vadd.f32 %v1664, %v1677
        %v1680 = vadd.f32 %v1665, %v1677
        %v1681 = vadd.f32 %v1666, %v1677
        %v1682 = vadd.f32 %v1667, %v1677
        %v1683 = vadd.f32 %v1668, %v1677
        %v1684 = vadd.f32 %v1669, %v1677
        %v1685 = vadd.f32 %v1670, %v1677
        %v1686 = vadd.f32 %v1671, %v1677
        %v1687 = vxor.u32 %v1679, 2147483648
        %v1688 = vxor.u32 %v1680, 2147483648
        %v1689 = vxor.u32 %v1681, 2147483648
        %v1690 = vxor.u32 %v1682, 2147483648
        %v1691 = vxor.u32 %v1683, 2147483648
        %v1692 = vxor.u32 %v1684, 2147483648
        %v1693 = vxor.u32 %v1685, 2147483648
        %v1694 = vxor.u32 %v1686, 2147483648
        %v1695 = vmul.f32 %v1687, 1.442695
        %v1696 = vpow.pop %v1695
        %v1697 = vmul.f32 %v1688, 1.442695
        %v1698 = vpow.pop %v1697
        %v1699 = vmul.f32 %v1689, 1.442695
        %v1700 = vpow.pop %v1699
        %v1701 = vmul.f32 %v1690, 1.442695
        %v1702 = vpow.pop %v1701
        %v1703 = vmul.f32 %v1691, 1.442695
        %v1704 = vpow.pop %v1703
        %v1705 = vmul.f32 %v1692, 1.442695
        %v1706 = vpow.pop %v1705
        %v1707 = vmul.f32 %v1693, 1.442695
        %v1708 = vpow.pop %v1707
        %v1709 = vmul.f32 %v1694, 1.442695
        %v1710 = vpow.pop %v1709
        %v1711 = vadd.f32 %v1696, 1.0
        %v1712 = vadd.f32 %v1698, 1.0
        %v1713 = vadd.f32 %v1700, 1.0
        %v1714 = vadd.f32 %v1702, 1.0
        %v1715 = vadd.f32 %v1704, 1.0
        %v1716 = vadd.f32 %v1706, 1.0
        %v1717 = vadd.f32 %v1708, 1.0
        %v1718 = vadd.f32 %v1710, 1.0
        %v1719 = vrcp.pop %v1711
        %v1720 = vmul.f32 1.0, %v1719
        %v1721 = vrcp.pop %v1712
        %v1722 = vmul.f32 1.0, %v1721
        %v1723 = vrcp.pop %v1713
        %v1724 = vmul.f32 1.0, %v1723
        %v1725 = vrcp.pop %v1714
        %v1726 = vmul.f32 1.0, %v1725
        %v1727 = vrcp.pop %v1715
        %v1728 = vmul.f32 1.0, %v1727
        %v1729 = vrcp.pop %v1716
        %v1730 = vmul.f32 1.0, %v1729
        %v1731 = vrcp.pop %v1717
        %v1732 = vmul.f32 1.0, %v1731
        %v1733 = vrcp.pop %v1718
        %v1734 = vmul.f32 1.0, %v1733
        %v1735 = vmul.f32 %v1679, %v1720
        %v1736 = vmul.f32 %v1680, %v1722
        %v1737 = vmul.f32 %v1681, %v1724
        %v1738 = vmul.f32 %v1682, %v1726
        %v1739 = vmul.f32 %v1683, %v1728
        %v1740 = vmul.f32 %v1684, %v1730
        %v1741 = vmul.f32 %v1685, %v1732
        %v1742 = vmul.f32 %v1686, %v1734
        %1743 = vst.msk [vmem:[%s621] sm:$0xff] %vm1534, %v1735
        %1744 = vst.msk [vmem:[%s621 + $0x8] sm:$0xff] %vm1534, %v1736
        %1745 = vst.msk [vmem:[%s621 + $0x10] sm:$0xff] %vm1534, %v1737
        %1746 = vst.msk [vmem:[%s621 + $0x18] sm:$0xff] %vm1534, %v1738
        %1747 = vst.msk [vmem:[%s621 + $0x20] sm:$0xff] %vm1534, %v1739
        %1748 = vst.msk [vmem:[%s621 + $0x28] sm:$0xff] %vm1534, %v1740
        %1749 = vst.msk [vmem:[%s621 + $0x30] sm:$0xff] %vm1534, %v1741
        %1750 = vst.msk [vmem:[%s621 + $0x38] sm:$0xff] %vm1534, %v1742
      $region64: #{tpu_custom_call.1} parent=51 // pred_fallthru
        _
      %s1751 = smul.u32 8, %s35
      %p1752 = scmp.lt.s32.totalorder %s1751, 31
      %s1753 = scalar_select %p1752, %s1751, 31
      %s1754 = smul.addr %s1753, 8
      %s1755 = scalar_lea.vmem %s10, %s1754
      // Predicated region
      $region65: #{tpu_custom_call.1} parent=51 // pred_check
        %p1756 = pneg %p314
      $region66: #{tpu_custom_call.1} parent=51 // pred_check_branch
        %1758 = sbr.rel (%p1756) target = $region68
      $region67: #{tpu_custom_call.1} parent=51 // pred_region
        %s1759 = smul.u32 8, %s35
      $region68: #{tpu_custom_call.1} parent=51 // pred_fallthru
        _
    $region52: #{tpu_custom_call.1} parent=5 // pred_fallthru
      _
    %p1760 = scmp.le.s32.totalorder 2, %s26
    // Predicated region
    $region69: #{tpu_custom_call.1} parent=5 // pred_check
      %p1761 = pneg %p1760
    $region70: #{tpu_custom_call.1} parent=5 // pred_check_branch
      %1763 = sbr.rel (%p1761) target = $region72
    $region71: #{tpu_custom_call.1} parent=5 // pred_region
      %s1764 = ssub.s32 %s26, 2
      // Predicated region
      $region73: #{tpu_custom_call.1} parent=71 // pred_check
        %p1765 = pneg %p320
      $region74: #{tpu_custom_call.1} parent=71 // pred_check_branch
        %1767 = sbr.rel (%p1765) target = $region76
      $region75: #{tpu_custom_call.1} parent=71 // pred_region
        %s1768 = smul.u32 8, %s37
        %p1769 = scmp.lt.s32.totalorder %s1768, 31
        %s1770 = scalar_select %p1769, %s1768, 31
        %s1771 = smul.addr %s1770, 8
        %s1772 = scalar_lea.vmem %s10, %s1771
      $region76: #{tpu_custom_call.1} parent=71 // pred_fallthru
        _
    $region72: #{tpu_custom_call.1} parent=5 // pred_fallthru
      _
  $region6: #{tpu_custom_call.1} parent=0 // loop_footer
    %s30 = sadd.s32 1, %s26
  $region7: #{tpu_custom_call.1} parent=0 // loop_footer_branch
    %25 = sbr.rel target = $region3
  $region8: #{tpu_custom_call.1} parent=0 // loop_exit
    _

</llo_original>
